<compile_context>
chip_gen: v7x
topology: tpu7x:2x2x1
jax: 0.10.0
libtpu: 0.0.40
codegen_flags: <defaults>
</compile_context>

<pallas_src>
import functools
import math

import jax
import jax.numpy as jnp
from jax import lax
from jax.experimental import pallas as pl
from jax.experimental.pallas import tpu as pltpu

# ---- small, forward-consistent shapes -------------------------------------
BATCH = 2
SEQ = 8          # number of tokens
HIDDEN = 32      # config.hidden_size
NUM_HEADS = 4    # config.transformer.num_heads
HEAD_DIM = HIDDEN // NUM_HEADS
MLP_DIM = 64     # config.transformer.mlp_dim
N_CHANNELS = 32  # stand-in for n_channels (only feeds the *unused* self.conv)
EPS = 1e-6

# Sublane-row indices into the parameter table (lane offset is always 0).
_ROW_LN1G, _ROW_LN1B, _ROW_BQKV, _ROW_BO = 0, 1, 2, 3
_ROW_LN2G, _ROW_LN2B, _ROW_B1, _ROW_B2 = 4, 5, 6, 7
_VEC_ROWS, _VEC_W = 8, 3 * HIDDEN


def _layernorm(x, gamma, beta):
    mu = jnp.mean(x, axis=-1, keepdims=True)
    var = jnp.mean((x - mu) ** 2, axis=-1, keepdims=True)
    return (x - mu) * lax.rsqrt(var + EPS) * gamma + beta


@functools.lru_cache(maxsize=None)
def _make_encoder_kernel(vis, batch, seq):
    """Kernel factory; vis/batch/seq are compile-time static."""
    scale = 1.0 / math.sqrt(HEAD_DIM)

    def kernel(x_ref, w_qkv_ref, w_o_ref, w_1_ref, w_2_ref, vec_ref, out_ref):
        x = x_ref[...]                                            # (B*S, H) f32

        # Parameter table: one vector per sublane row, lane offset 0 (no lane shifts).
        ln1_g = vec_ref[_ROW_LN1G:_ROW_LN1G + 1, :HIDDEN]
        ln1_b = vec_ref[_ROW_LN1B:_ROW_LN1B + 1, :HIDDEN]
        bqkv = vec_ref[_ROW_BQKV:_ROW_BQKV + 1, :3 * HIDDEN]      # head-major
        bo = vec_ref[_ROW_BO:_ROW_BO + 1, :HIDDEN]
        ln2_g = vec_ref[_ROW_LN2G:_ROW_LN2G + 1, :HIDDEN]
        ln2_b = vec_ref[_ROW_LN2B:_ROW_LN2B + 1, :HIDDEN]
        b1 = vec_ref[_ROW_B1:_ROW_B1 + 1, :MLP_DIM]
        b2 = vec_ref[_ROW_B2:_ROW_B2 + 1, :HIDDEN]

        # ---- pre-attention LayerNorm (f32 statistics) ----
        xn = _layernorm(x, ln1_g, ln1_b)

        # ---- fused, head-major QKV projection (bf16 operands, f32 accumulate) ----
        qkv = jnp.dot(xn.astype(jnp.bfloat16), w_qkv_ref[...],
                      preferred_element_type=jnp.float32) + bqkv   # (B*S, 3H) f32

        ctx_rows = []
        attn_rows = []
        for b in range(batch):                                     # static unroll
            rs = slice(b * seq, (b + 1) * seq)
            ctx_heads = []
            p_heads = []
            for h in range(NUM_HEADS):                             # static unroll
                base = h * 3 * HEAD_DIM                            # head-major slab
                q_h = qkv[rs, base:base + HEAD_DIM].astype(jnp.bfloat16)
                k_h = qkv[rs, base + HEAD_DIM:base + 2 * HEAD_DIM].astype(jnp.bfloat16)
                v_h = qkv[rs, base + 2 * HEAD_DIM:base + 3 * HEAD_DIM].astype(jnp.bfloat16)

                # Contract last dims of BOTH operands -> no materialized transpose.
                s = lax.dot_general(q_h, k_h, (((1,), (1,)), ((), ())),
                                    preferred_element_type=jnp.float32) * scale
                s = s - jnp.max(s, axis=-1, keepdims=True)
                e = jnp.exp(s)
                p = e / jnp.sum(e, axis=-1, keepdims=True)          # exact: stored rows sum to 1
                if vis:
                    p_heads.append(p)
                ctx_heads.append(jnp.dot(p.astype(jnp.bfloat16), v_h,
                                         preferred_element_type=jnp.float32))   # (S, HD)
            ctx_rows.append(jnp.concatenate(ctx_heads, axis=-1))    # (S, H)
            if vis:
                attn_rows.append(jnp.concatenate(p_heads, axis=-1))  # (S, NH*S)

        # ---- single fused Wo matmul over all batches / heads ----
        ctx = jnp.concatenate(ctx_rows, axis=0)                      # (B*S, H)
        attn_out = jnp.dot(ctx.astype(jnp.bfloat16), w_o_ref[...],
                           preferred_element_type=jnp.float32) + bo  # (B*S, H)
        h1 = x + attn_out                                            # residual 1

        # ---- MLP branch (f32 elementwise, bf16 MXU operands) ----
        hn = _layernorm(h1, ln2_g, ln2_b)
        m = jnp.dot(hn.astype(jnp.bfloat16), w_1_ref[...],
                    preferred_element_type=jnp.float32) + b1         # (B*S, MLP)
        # TODO(synk): tanh-approx GELU; PyTorch nn.GELU default is exact erf (~1e-3 rel).
        m = jax.nn.gelu(m, approximate=True)
        m = jnp.dot(m.astype(jnp.bfloat16), w_2_ref[...],
                    preferred_element_type=jnp.float32) + b2         # (B*S, H)
        encoded = h1 + m                                             # residual 2

        if vis:
            # Pack [encoded | attention weights] into one slab: single store / DMA.
            out_ref[...] = jnp.concatenate(
                [encoded, jnp.concatenate(attn_rows, axis=0)], axis=-1)
        else:
            out_ref[...] = encoded

    return kernel


def _head_major(mats):
    """Interleave per-head column blocks: [q_h0 | k_h0 | v_h0 | q_h1 | ...]."""
    cols = []
    for h in range(NUM_HEADS):
        c = slice(h * HEAD_DIM, (h + 1) * HEAD_DIM)
        cols.extend(m[..., c] for m in mats)
    return jnp.concatenate(cols, axis=-1)


def _pack_param_table(p):
    """(8, 3H) f32 table: one parameter vector per sublane row, lane offset 0."""
    bqkv = _head_major([p["bq"], p["bk"], p["bv"]])                  # (1, 3H)

    def row(v):
        v = v.reshape(1, -1)
        return jnp.pad(v, ((0, 0), (0, _VEC_W - v.shape[1])))

    rows = [p["ln1_g"], p["ln1_b"], bqkv, p["bo"],
            p["ln2_g"], p["ln2_b"], p["b1"], p["b2"]]
    return jnp.concatenate([row(r) for r in rows], axis=0)           # (8, 3H)


_VMEM_SPEC = pl.BlockSpec(memory_space=pltpu.MemorySpace.VMEM)


def init_params(key):
    ks = jax.random.split(key, 8)
    scale = 0.02
    params = dict(
        ln1_g=jnp.ones((1, HIDDEN), jnp.float32),
        ln1_b=jnp.zeros((1, HIDDEN), jnp.float32),
        wq=scale * jax.random.normal(ks[0], (HIDDEN, HIDDEN), jnp.float32),
        bq=jnp.zeros((1, HIDDEN), jnp.float32),
        wk=scale * jax.random.normal(ks[1], (HIDDEN, HIDDEN), jnp.float32),
        bk=jnp.zeros((1, HIDDEN), jnp.float32),
        wv=scale * jax.random.normal(ks[2], (HIDDEN, HIDDEN), jnp.float32),
        bv=jnp.zeros((1, HIDDEN), jnp.float32),
        wo=scale * jax.random.normal(ks[3], (HIDDEN, HIDDEN), jnp.float32),
        bo=jnp.zeros((1, HIDDEN), jnp.float32),
        ln2_g=jnp.ones((1, HIDDEN), jnp.float32),
        ln2_b=jnp.zeros((1, HIDDEN), jnp.float32),
        w1=scale * jax.random.normal(ks[4], (HIDDEN, MLP_DIM), jnp.float32),
        b1=jnp.zeros((1, MLP_DIM), jnp.float32),
        w2=scale * jax.random.normal(ks[5], (MLP_DIM, HIDDEN), jnp.float32),
        b2=jnp.zeros((1, HIDDEN), jnp.float32),
    )
    # Declared in Encoder.__init__ but never used in Encoder.forward:
    unused = dict(
        encoder_norm_g=jnp.ones((HIDDEN,), jnp.float32),
        encoder_norm_b=jnp.zeros((HIDDEN,), jnp.float32),
        conv_w=scale * jax.random.normal(ks[6], (N_CHANNELS // 2, N_CHANNELS, 1, 1),
                                         jnp.float32),
        conv_b=jnp.zeros((N_CHANNELS // 2,), jnp.float32),
    )
    return params, unused


@functools.partial(jax.jit, static_argnames=("vis",))
def encoder_forward(x, params, vis=True):
    """x: (B, S, H) float32 -> (encoded (B, S, H), attn_weights list)."""
    B, S, H = x.shape
    assert H == HIDDEN
    p = params
    xf = x.reshape(B * S, H)

    # Wrapper-side packing: weights cast to bf16 once, lane-aligned slabs,
    # biases/LN in one sublane-row-indexed table -> 6 input DMAs total.
    w_qkv = _head_major([p["wq"], p["wk"], p["wv"]]).astype(jnp.bfloat16)   # (H, 3H)
    w_o = p["wo"].astype(jnp.bfloat16)                                      # (H, H)
    w_1 = p["w1"].astype(jnp.bfloat16)                                      # (H, MLP)
    w_2 = p["w2"].astype(jnp.bfloat16)                                      # (MLP, H)
    vec = _pack_param_table(p)                                              # (8, 3H)

    kernel = _make_encoder_kernel(bool(vis), int(B), int(S))
    out_cols = H + (NUM_HEADS * S if vis else 0)
    slab = pl.pallas_call(
        kernel,
        out_shape=jax.ShapeDtypeStruct((B * S, out_cols), jnp.float32),
        in_specs=[_VMEM_SPEC] * 6,
        out_specs=_VMEM_SPEC,
    )(xf, w_qkv, w_o, w_1, w_2, vec)

    encoded = slab[:, :H].reshape(B, S, H)
    if vis:
        attn = slab[:, H:].reshape(B, S, NUM_HEADS, S).transpose(0, 2, 1, 3)
        attn_weights = [attn]
    else:
        attn_weights = []
    return encoded, attn_weights


def encoder_reference(x, params):
    """Pure-JAX f32 reference of the same transformer block."""
    p = params

    def ln(v, g, b):
        mu = v.mean(-1, keepdims=True)
        var = ((v - mu) ** 2).mean(-1, keepdims=True)
        return (v - mu) / jnp.sqrt(var + EPS) * g + b

    B, S, H = x.shape
    xn = ln(x, p["ln1_g"][0], p["ln1_b"][0])
    q = xn @ p["wq"] + p["bq"][0]
    k = xn @ p["wk"] + p["bk"][0]
    v = xn @ p["wv"] + p["bv"][0]
    qh = q.reshape(B, S, NUM_HEADS, HEAD_DIM).transpose(0, 2, 1, 3)
    kh = k.reshape(B, S, NUM_HEADS, HEAD_DIM).transpose(0, 2, 1, 3)
    vh = v.reshape(B, S, NUM_HEADS, HEAD_DIM).transpose(0, 2, 1, 3)
    s = jnp.einsum("bhqd,bhkd->bhqk", qh, kh) / math.sqrt(HEAD_DIM)
    pw = jax.nn.softmax(s, axis=-1)
    ctx = jnp.einsum("bhqk,bhkd->bhqd", pw, vh)
    ctx = ctx.transpose(0, 2, 1, 3).reshape(B, S, H)
    h1 = x + ctx @ p["wo"] + p["bo"][0]
    hn = ln(h1, p["ln2_g"][0], p["ln2_b"][0])
    m = jax.nn.gelu(hn @ p["w1"] + p["b1"][0], approximate=True)
    m = m @ p["w2"] + p["b2"][0]
    return h1 + m, pw


if __name__ == "__main__":
    key = jax.random.PRNGKey(0)
    k_x, k_p = jax.random.split(key)
    x = jax.random.normal(k_x, (BATCH, SEQ, HIDDEN), jnp.float32)
    params, _unused = init_params(k_p)

    encoded, attn_weights = encoder_forward(x, params, vis=True)
    encoded = jax.block_until_ready(encoded)
    attn = jax.block_until_ready(attn_weights[0])

    # vis=False variant: no attention-weight columns in the output slab.
    encoded_nv, attn_nv = encoder_forward(x, params, vis=False)
    encoded_nv = jax.block_until_ready(encoded_nv)

    assert encoded.shape == (BATCH, SEQ, HIDDEN)
    assert attn.shape == (BATCH, NUM_HEADS, SEQ, SEQ)
    assert attn_nv == []
    assert bool(jnp.all(jnp.isfinite(encoded)))

    ref_enc, ref_attn = encoder_reference(x, params)
    assert bool(jnp.allclose(encoded, ref_enc, atol=5e-2, rtol=5e-2)), \
        float(jnp.max(jnp.abs(encoded - ref_enc)))
    assert bool(jnp.allclose(attn, ref_attn, atol=1e-2, rtol=1e-2))
    # attention rows are a probability distribution (exact softmax denominator)
    assert bool(jnp.allclose(attn.sum(-1), 1.0, atol=1e-5))
    assert bool(jnp.allclose(encoded_nv, encoded, atol=1e-5))

    print("KERNEL_OK")
</pallas_src>

<mosaic_0001>
module attributes {stable_mosaic.version = 11 : i64} {
  func.func @kernel(%arg0: memref<16x32xf32, #tpu.memory_space<vmem>>, %arg1: memref<32x96xbf16, #tpu.memory_space<vmem>>, %arg2: memref<32x32xbf16, #tpu.memory_space<vmem>>, %arg3: memref<32x64xbf16, #tpu.memory_space<vmem>>, %arg4: memref<64x32xbf16, #tpu.memory_space<vmem>>, %arg5: memref<8x96xf32, #tpu.memory_space<vmem>>, %arg6: memref<16x64xf32, #tpu.memory_space<vmem>>) attributes {dimension_semantics = [], scalar_prefetch = 0 : i64, scratch_operands = 0 : i64, tpu.core_type = #tpu.core_type<tc>} {
    %c0 = arith.constant 0 : index
    %c0_0 = arith.constant 0 : index
    %0 = vector.load %arg0[%c0, %c0_0] : memref<16x32xf32, #tpu.memory_space<vmem>>, vector<16x32xf32>
    %c0_1 = arith.constant 0 : index
    %c0_2 = arith.constant 0 : index
    %1 = vector.load %arg5[%c0_1, %c0_2] : memref<8x96xf32, #tpu.memory_space<vmem>>, vector<1x32xf32>
    %c1 = arith.constant 1 : index
    %c0_3 = arith.constant 0 : index
    %2 = vector.load %arg5[%c1, %c0_3] : memref<8x96xf32, #tpu.memory_space<vmem>>, vector<1x32xf32>
    %c2 = arith.constant 2 : index
    %c0_4 = arith.constant 0 : index
    %3 = vector.load %arg5[%c2, %c0_4] : memref<8x96xf32, #tpu.memory_space<vmem>>, vector<1x96xf32>
    %c3 = arith.constant 3 : index
    %c0_5 = arith.constant 0 : index
    %4 = vector.load %arg5[%c3, %c0_5] : memref<8x96xf32, #tpu.memory_space<vmem>>, vector<1x32xf32>
    %c4 = arith.constant 4 : index
    %c0_6 = arith.constant 0 : index
    %5 = vector.load %arg5[%c4, %c0_6] : memref<8x96xf32, #tpu.memory_space<vmem>>, vector<1x32xf32>
    %c5 = arith.constant 5 : index
    %c0_7 = arith.constant 0 : index
    %6 = vector.load %arg5[%c5, %c0_7] : memref<8x96xf32, #tpu.memory_space<vmem>>, vector<1x32xf32>
    %c6 = arith.constant 6 : index
    %c0_8 = arith.constant 0 : index
    %7 = vector.load %arg5[%c6, %c0_8] : memref<8x96xf32, #tpu.memory_space<vmem>>, vector<1x64xf32>
    %c7 = arith.constant 7 : index
    %c0_9 = arith.constant 0 : index
    %8 = vector.load %arg5[%c7, %c0_9] : memref<8x96xf32, #tpu.memory_space<vmem>>, vector<1x32xf32>
    %cst = arith.constant dense<0.000000e+00> : vector<16xf32>
    %9 = vector.multi_reduction <add>, %0, %cst [1] : vector<16x32xf32> to vector<16xf32>
    %10 = vector.shape_cast %9 : vector<16xf32> to vector<16x1xf32>
    %cst_10 = arith.constant 3.200000e+01 : f32
    %11 = vector.broadcast %cst_10 : f32 to vector<16x1xf32>
    %12 = arith.divf %10, %11 : vector<16x1xf32>
    %13 = vector.broadcast %12 : vector<16x1xf32> to vector<16x32xf32>
    %14 = arith.subf %0, %13 : vector<16x32xf32>
    %15 = arith.mulf %14, %14 : vector<16x32xf32>
    %cst_11 = arith.constant dense<0.000000e+00> : vector<16xf32>
    %16 = vector.multi_reduction <add>, %15, %cst_11 [1] : vector<16x32xf32> to vector<16xf32>
    %17 = vector.shape_cast %16 : vector<16xf32> to vector<16x1xf32>
    %cst_12 = arith.constant 3.200000e+01 : f32
    %18 = vector.broadcast %cst_12 : f32 to vector<16x1xf32>
    %19 = arith.divf %17, %18 : vector<16x1xf32>
    %20 = vector.broadcast %12 : vector<16x1xf32> to vector<16x32xf32>
    %21 = arith.subf %0, %20 : vector<16x32xf32>
    %cst_13 = arith.constant 9.99999997E-7 : f32
    %22 = vector.broadcast %cst_13 : f32 to vector<16x1xf32>
    %23 = arith.addf %19, %22 : vector<16x1xf32>
    %24 = math.rsqrt %23 : vector<16x1xf32>
    %25 = vector.broadcast %24 : vector<16x1xf32> to vector<16x32xf32>
    %26 = arith.mulf %21, %25 : vector<16x32xf32>
    %27 = vector.broadcast %1 : vector<1x32xf32> to vector<16x32xf32>
    %28 = arith.mulf %26, %27 : vector<16x32xf32>
    %29 = vector.broadcast %2 : vector<1x32xf32> to vector<16x32xf32>
    %30 = arith.addf %28, %29 : vector<16x32xf32>
    %31 = arith.truncf %30 : vector<16x32xf32> to vector<16x32xbf16>
    %c0_14 = arith.constant 0 : index
    %c0_15 = arith.constant 0 : index
    %32 = vector.load %arg1[%c0_14, %c0_15] : memref<32x96xbf16, #tpu.memory_space<vmem>>, vector<32x96xbf16>
    %cst_16 = arith.constant dense<0.000000e+00> : vector<16x96xf32>
    %33 = tpu.matmul %31, %32, %cst_16 {dimension_numbers = #tpu.dot_dimension_numbers<[1], [0], [0], [1], [0, 0, 1, 1], [], []>} : vector<16x32xbf16>, vector<32x96xbf16>, vector<16x96xf32> -> vector<16x96xf32>
    %34 = vector.broadcast %3 : vector<1x96xf32> to vector<16x96xf32>
    %35 = arith.addf %33, %34 : vector<16x96xf32>
    %36 = vector.extract_strided_slice %35 {offsets = [0, 0], sizes = [8, 8], strides = [1, 1]} : vector<16x96xf32> to vector<8x8xf32>
    %37 = arith.truncf %36 : vector<8x8xf32> to vector<8x8xbf16>
    %38 = vector.extract_strided_slice %35 {offsets = [0, 8], sizes = [8, 8], strides = [1, 1]} : vector<16x96xf32> to vector<8x8xf32>
    %39 = arith.truncf %38 : vector<8x8xf32> to vector<8x8xbf16>
    %40 = vector.extract_strided_slice %35 {offsets = [0, 16], sizes = [8, 8], strides = [1, 1]} : vector<16x96xf32> to vector<8x8xf32>
    %41 = arith.truncf %40 : vector<8x8xf32> to vector<8x8xbf16>
    %cst_17 = arith.constant dense<0.000000e+00> : vector<8x8xf32>
    %42 = tpu.matmul %37, %39, %cst_17 {dimension_numbers = #tpu.dot_dimension_numbers<[1], [1], [0], [0], [0, 0, 1, 0], [], []>} : vector<8x8xbf16>, vector<8x8xbf16>, vector<8x8xf32> -> vector<8x8xf32>
    %cst_18 = arith.constant 0.353553385 : f32
    %43 = vector.broadcast %cst_18 : f32 to vector<8x8xf32>
    %44 = arith.mulf %42, %43 : vector<8x8xf32>
    %cst_19 = arith.constant dense<0xFF800000> : vector<8xf32>
    %45 = vector.multi_reduction <maximumf>, %44, %cst_19 [1] : vector<8x8xf32> to vector<8xf32>
    %46 = vector.shape_cast %45 : vector<8xf32> to vector<8x1xf32>
    %47 = vector.broadcast %46 : vector<8x1xf32> to vector<8x8xf32>
    %48 = arith.subf %44, %47 : vector<8x8xf32>
    %49 = math.exp %48 : vector<8x8xf32>
    %cst_20 = arith.constant dense<0.000000e+00> : vector<8xf32>
    %50 = vector.multi_reduction <add>, %49, %cst_20 [1] : vector<8x8xf32> to vector<8xf32>
    %51 = vector.shape_cast %50 : vector<8xf32> to vector<8x1xf32>
    %52 = vector.broadcast %51 : vector<8x1xf32> to vector<8x8xf32>
    %53 = arith.divf %49, %52 : vector<8x8xf32>
    %54 = arith.truncf %53 : vector<8x8xf32> to vector<8x8xbf16>
    %cst_21 = arith.constant dense<0.000000e+00> : vector<8x8xf32>
    %55 = tpu.matmul %54, %41, %cst_21 {dimension_numbers = #tpu.dot_dimension_numbers<[1], [0], [0], [1], [0, 0, 1, 1], [], []>} : vector<8x8xbf16>, vector<8x8xbf16>, vector<8x8xf32> -> vector<8x8xf32>
    %56 = vector.extract_strided_slice %35 {offsets = [0, 24], sizes = [8, 8], strides = [1, 1]} : vector<16x96xf32> to vector<8x8xf32>
    %57 = arith.truncf %56 : vector<8x8xf32> to vector<8x8xbf16>
    %58 = vector.extract_strided_slice %35 {offsets = [0, 32], sizes = [8, 8], strides = [1, 1]} : vector<16x96xf32> to vector<8x8xf32>
    %59 = arith.truncf %58 : vector<8x8xf32> to vector<8x8xbf16>
    %60 = vector.extract_strided_slice %35 {offsets = [0, 40], sizes = [8, 8], strides = [1, 1]} : vector<16x96xf32> to vector<8x8xf32>
    %61 = arith.truncf %60 : vector<8x8xf32> to vector<8x8xbf16>
    %cst_22 = arith.constant dense<0.000000e+00> : vector<8x8xf32>
    %62 = tpu.matmul %57, %59, %cst_22 {dimension_numbers = #tpu.dot_dimension_numbers<[1], [1], [0], [0], [0, 0, 1, 0], [], []>} : vector<8x8xbf16>, vector<8x8xbf16>, vector<8x8xf32> -> vector<8x8xf32>
    %cst_23 = arith.constant 0.353553385 : f32
    %63 = vector.broadcast %cst_23 : f32 to vector<8x8xf32>
    %64 = arith.mulf %62, %63 : vector<8x8xf32>
    %cst_24 = arith.constant dense<0xFF800000> : vector<8xf32>
    %65 = vector.multi_reduction <maximumf>, %64, %cst_24 [1] : vector<8x8xf32> to vector<8xf32>
    %66 = vector.shape_cast %65 : vector<8xf32> to vector<8x1xf32>
    %67 = vector.broadcast %66 : vector<8x1xf32> to vector<8x8xf32>
    %68 = arith.subf %64, %67 : vector<8x8xf32>
    %69 = math.exp %68 : vector<8x8xf32>
    %cst_25 = arith.constant dense<0.000000e+00> : vector<8xf32>
    %70 = vector.multi_reduction <add>, %69, %cst_25 [1] : vector<8x8xf32> to vector<8xf32>
    %71 = vector.shape_cast %70 : vector<8xf32> to vector<8x1xf32>
    %72 = vector.broadcast %71 : vector<8x1xf32> to vector<8x8xf32>
    %73 = arith.divf %69, %72 : vector<8x8xf32>
    %74 = arith.truncf %73 : vector<8x8xf32> to vector<8x8xbf16>
    %cst_26 = arith.constant dense<0.000000e+00> : vector<8x8xf32>
    %75 = tpu.matmul %74, %61, %cst_26 {dimension_numbers = #tpu.dot_dimension_numbers<[1], [0], [0], [1], [0, 0, 1, 1], [], []>} : vector<8x8xbf16>, vector<8x8xbf16>, vector<8x8xf32> -> vector<8x8xf32>
    %76 = vector.extract_strided_slice %35 {offsets = [0, 48], sizes = [8, 8], strides = [1, 1]} : vector<16x96xf32> to vector<8x8xf32>
    %77 = arith.truncf %76 : vector<8x8xf32> to vector<8x8xbf16>
    %78 = vector.extract_strided_slice %35 {offsets = [0, 56], sizes = [8, 8], strides = [1, 1]} : vector<16x96xf32> to vector<8x8xf32>
    %79 = arith.truncf %78 : vector<8x8xf32> to vector<8x8xbf16>
    %80 = vector.extract_strided_slice %35 {offsets = [0, 64], sizes = [8, 8], strides = [1, 1]} : vector<16x96xf32> to vector<8x8xf32>
    %81 = arith.truncf %80 : vector<8x8xf32> to vector<8x8xbf16>
    %cst_27 = arith.constant dense<0.000000e+00> : vector<8x8xf32>
    %82 = tpu.matmul %77, %79, %cst_27 {dimension_numbers = #tpu.dot_dimension_numbers<[1], [1], [0], [0], [0, 0, 1, 0], [], []>} : vector<8x8xbf16>, vector<8x8xbf16>, vector<8x8xf32> -> vector<8x8xf32>
    %cst_28 = arith.constant 0.353553385 : f32
    %83 = vector.broadcast %cst_28 : f32 to vector<8x8xf32>
    %84 = arith.mulf %82, %83 : vector<8x8xf32>
    %cst_29 = arith.constant dense<0xFF800000> : vector<8xf32>
    %85 = vector.multi_reduction <maximumf>, %84, %cst_29 [1] : vector<8x8xf32> to vector<8xf32>
    %86 = vector.shape_cast %85 : vector<8xf32> to vector<8x1xf32>
    %87 = vector.broadcast %86 : vector<8x1xf32> to vector<8x8xf32>
    %88 = arith.subf %84, %87 : vector<8x8xf32>
    %89 = math.exp %88 : vector<8x8xf32>
    %cst_30 = arith.constant dense<0.000000e+00> : vector<8xf32>
    %90 = vector.multi_reduction <add>, %89, %cst_30 [1] : vector<8x8xf32> to vector<8xf32>
    %91 = vector.shape_cast %90 : vector<8xf32> to vector<8x1xf32>
    %92 = vector.broadcast %91 : vector<8x1xf32> to vector<8x8xf32>
    %93 = arith.divf %89, %92 : vector<8x8xf32>
    %94 = arith.truncf %93 : vector<8x8xf32> to vector<8x8xbf16>
    %cst_31 = arith.constant dense<0.000000e+00> : vector<8x8xf32>
    %95 = tpu.matmul %94, %81, %cst_31 {dimension_numbers = #tpu.dot_dimension_numbers<[1], [0], [0], [1], [0, 0, 1, 1], [], []>} : vector<8x8xbf16>, vector<8x8xbf16>, vector<8x8xf32> -> vector<8x8xf32>
    %96 = vector.extract_strided_slice %35 {offsets = [0, 72], sizes = [8, 8], strides = [1, 1]} : vector<16x96xf32> to vector<8x8xf32>
    %97 = arith.truncf %96 : vector<8x8xf32> to vector<8x8xbf16>
    %98 = vector.extract_strided_slice %35 {offsets = [0, 80], sizes = [8, 8], strides = [1, 1]} : vector<16x96xf32> to vector<8x8xf32>
    %99 = arith.truncf %98 : vector<8x8xf32> to vector<8x8xbf16>
    %100 = vector.extract_strided_slice %35 {offsets = [0, 88], sizes = [8, 8], strides = [1, 1]} : vector<16x96xf32> to vector<8x8xf32>
    %101 = arith.truncf %100 : vector<8x8xf32> to vector<8x8xbf16>
    %cst_32 = arith.constant dense<0.000000e+00> : vector<8x8xf32>
    %102 = tpu.matmul %97, %99, %cst_32 {dimension_numbers = #tpu.dot_dimension_numbers<[1], [1], [0], [0], [0, 0, 1, 0], [], []>} : vector<8x8xbf16>, vector<8x8xbf16>, vector<8x8xf32> -> vector<8x8xf32>
    %cst_33 = arith.constant 0.353553385 : f32
    %103 = vector.broadcast %cst_33 : f32 to vector<8x8xf32>
    %104 = arith.mulf %102, %103 : vector<8x8xf32>
    %cst_34 = arith.constant dense<0xFF800000> : vector<8xf32>
    %105 = vector.multi_reduction <maximumf>, %104, %cst_34 [1] : vector<8x8xf32> to vector<8xf32>
    %106 = vector.shape_cast %105 : vector<8xf32> to vector<8x1xf32>
    %107 = vector.broadcast %106 : vector<8x1xf32> to vector<8x8xf32>
    %108 = arith.subf %104, %107 : vector<8x8xf32>
    %109 = math.exp %108 : vector<8x8xf32>
    %cst_35 = arith.constant dense<0.000000e+00> : vector<8xf32>
    %110 = vector.multi_reduction <add>, %109, %cst_35 [1] : vector<8x8xf32> to vector<8xf32>
    %111 = vector.shape_cast %110 : vector<8xf32> to vector<8x1xf32>
    %112 = vector.broadcast %111 : vector<8x1xf32> to vector<8x8xf32>
    %113 = arith.divf %109, %112 : vector<8x8xf32>
    %114 = arith.truncf %113 : vector<8x8xf32> to vector<8x8xbf16>
    %cst_36 = arith.constant dense<0.000000e+00> : vector<8x8xf32>
    %115 = tpu.matmul %114, %101, %cst_36 {dimension_numbers = #tpu.dot_dimension_numbers<[1], [0], [0], [1], [0, 0, 1, 1], [], []>} : vector<8x8xbf16>, vector<8x8xbf16>, vector<8x8xf32> -> vector<8x8xf32>
    %116 = tpu.concatenate %55, %75, %95, %115 in 1 : vector<8x8xf32>, vector<8x8xf32>, vector<8x8xf32>, vector<8x8xf32> -> vector<8x32xf32>
    %117 = tpu.concatenate %53, %73, %93, %113 in 1 : vector<8x8xf32>, vector<8x8xf32>, vector<8x8xf32>, vector<8x8xf32> -> vector<8x32xf32>
    %118 = vector.extract_strided_slice %35 {offsets = [8, 0], sizes = [8, 8], strides = [1, 1]} : vector<16x96xf32> to vector<8x8xf32>
    %119 = arith.truncf %118 : vector<8x8xf32> to vector<8x8xbf16>
    %120 = vector.extract_strided_slice %35 {offsets = [8, 8], sizes = [8, 8], strides = [1, 1]} : vector<16x96xf32> to vector<8x8xf32>
    %121 = arith.truncf %120 : vector<8x8xf32> to vector<8x8xbf16>
    %122 = vector.extract_strided_slice %35 {offsets = [8, 16], sizes = [8, 8], strides = [1, 1]} : vector<16x96xf32> to vector<8x8xf32>
    %123 = arith.truncf %122 : vector<8x8xf32> to vector<8x8xbf16>
    %cst_37 = arith.constant dense<0.000000e+00> : vector<8x8xf32>
    %124 = tpu.matmul %119, %121, %cst_37 {dimension_numbers = #tpu.dot_dimension_numbers<[1], [1], [0], [0], [0, 0, 1, 0], [], []>} : vector<8x8xbf16>, vector<8x8xbf16>, vector<8x8xf32> -> vector<8x8xf32>
    %cst_38 = arith.constant 0.353553385 : f32
    %125 = vector.broadcast %cst_38 : f32 to vector<8x8xf32>
    %126 = arith.mulf %124, %125 : vector<8x8xf32>
    %cst_39 = arith.constant dense<0xFF800000> : vector<8xf32>
    %127 = vector.multi_reduction <maximumf>, %126, %cst_39 [1] : vector<8x8xf32> to vector<8xf32>
    %128 = vector.shape_cast %127 : vector<8xf32> to vector<8x1xf32>
    %129 = vector.broadcast %128 : vector<8x1xf32> to vector<8x8xf32>
    %130 = arith.subf %126, %129 : vector<8x8xf32>
    %131 = math.exp %130 : vector<8x8xf32>
    %cst_40 = arith.constant dense<0.000000e+00> : vector<8xf32>
    %132 = vector.multi_reduction <add>, %131, %cst_40 [1] : vector<8x8xf32> to vector<8xf32>
    %133 = vector.shape_cast %132 : vector<8xf32> to vector<8x1xf32>
    %134 = vector.broadcast %133 : vector<8x1xf32> to vector<8x8xf32>
    %135 = arith.divf %131, %134 : vector<8x8xf32>
    %136 = arith.truncf %135 : vector<8x8xf32> to vector<8x8xbf16>
    %cst_41 = arith.constant dense<0.000000e+00> : vector<8x8xf32>
    %137 = tpu.matmul %136, %123, %cst_41 {dimension_numbers = #tpu.dot_dimension_numbers<[1], [0], [0], [1], [0, 0, 1, 1], [], []>} : vector<8x8xbf16>, vector<8x8xbf16>, vector<8x8xf32> -> vector<8x8xf32>
    %138 = vector.extract_strided_slice %35 {offsets = [8, 24], sizes = [8, 8], strides = [1, 1]} : vector<16x96xf32> to vector<8x8xf32>
    %139 = arith.truncf %138 : vector<8x8xf32> to vector<8x8xbf16>
    %140 = vector.extract_strided_slice %35 {offsets = [8, 32], sizes = [8, 8], strides = [1, 1]} : vector<16x96xf32> to vector<8x8xf32>
    %141 = arith.truncf %140 : vector<8x8xf32> to vector<8x8xbf16>
    %142 = vector.extract_strided_slice %35 {offsets = [8, 40], sizes = [8, 8], strides = [1, 1]} : vector<16x96xf32> to vector<8x8xf32>
    %143 = arith.truncf %142 : vector<8x8xf32> to vector<8x8xbf16>
    %cst_42 = arith.constant dense<0.000000e+00> : vector<8x8xf32>
    %144 = tpu.matmul %139, %141, %cst_42 {dimension_numbers = #tpu.dot_dimension_numbers<[1], [1], [0], [0], [0, 0, 1, 0], [], []>} : vector<8x8xbf16>, vector<8x8xbf16>, vector<8x8xf32> -> vector<8x8xf32>
    %cst_43 = arith.constant 0.353553385 : f32
    %145 = vector.broadcast %cst_43 : f32 to vector<8x8xf32>
    %146 = arith.mulf %144, %145 : vector<8x8xf32>
    %cst_44 = arith.constant dense<0xFF800000> : vector<8xf32>
    %147 = vector.multi_reduction <maximumf>, %146, %cst_44 [1] : vector<8x8xf32> to vector<8xf32>
    %148 = vector.shape_cast %147 : vector<8xf32> to vector<8x1xf32>
    %149 = vector.broadcast %148 : vector<8x1xf32> to vector<8x8xf32>
    %150 = arith.subf %146, %149 : vector<8x8xf32>
    %151 = math.exp %150 : vector<8x8xf32>
    %cst_45 = arith.constant dense<0.000000e+00> : vector<8xf32>
    %152 = vector.multi_reduction <add>, %151, %cst_45 [1] : vector<8x8xf32> to vector<8xf32>
    %153 = vector.shape_cast %152 : vector<8xf32> to vector<8x1xf32>
    %154 = vector.broadcast %153 : vector<8x1xf32> to vector<8x8xf32>
    %155 = arith.divf %151, %154 : vector<8x8xf32>
    %156 = arith.truncf %155 : vector<8x8xf32> to vector<8x8xbf16>
    %cst_46 = arith.constant dense<0.000000e+00> : vector<8x8xf32>
    %157 = tpu.matmul %156, %143, %cst_46 {dimension_numbers = #tpu.dot_dimension_numbers<[1], [0], [0], [1], [0, 0, 1, 1], [], []>} : vector<8x8xbf16>, vector<8x8xbf16>, vector<8x8xf32> -> vector<8x8xf32>
    %158 = vector.extract_strided_slice %35 {offsets = [8, 48], sizes = [8, 8], strides = [1, 1]} : vector<16x96xf32> to vector<8x8xf32>
    %159 = arith.truncf %158 : vector<8x8xf32> to vector<8x8xbf16>
    %160 = vector.extract_strided_slice %35 {offsets = [8, 56], sizes = [8, 8], strides = [1, 1]} : vector<16x96xf32> to vector<8x8xf32>
    %161 = arith.truncf %160 : vector<8x8xf32> to vector<8x8xbf16>
    %162 = vector.extract_strided_slice %35 {offsets = [8, 64], sizes = [8, 8], strides = [1, 1]} : vector<16x96xf32> to vector<8x8xf32>
    %163 = arith.truncf %162 : vector<8x8xf32> to vector<8x8xbf16>
    %cst_47 = arith.constant dense<0.000000e+00> : vector<8x8xf32>
    %164 = tpu.matmul %159, %161, %cst_47 {dimension_numbers = #tpu.dot_dimension_numbers<[1], [1], [0], [0], [0, 0, 1, 0], [], []>} : vector<8x8xbf16>, vector<8x8xbf16>, vector<8x8xf32> -> vector<8x8xf32>
    %cst_48 = arith.constant 0.353553385 : f32
    %165 = vector.broadcast %cst_48 : f32 to vector<8x8xf32>
    %166 = arith.mulf %164, %165 : vector<8x8xf32>
    %cst_49 = arith.constant dense<0xFF800000> : vector<8xf32>
    %167 = vector.multi_reduction <maximumf>, %166, %cst_49 [1] : vector<8x8xf32> to vector<8xf32>
    %168 = vector.shape_cast %167 : vector<8xf32> to vector<8x1xf32>
    %169 = vector.broadcast %168 : vector<8x1xf32> to vector<8x8xf32>
    %170 = arith.subf %166, %169 : vector<8x8xf32>
    %171 = math.exp %170 : vector<8x8xf32>
    %cst_50 = arith.constant dense<0.000000e+00> : vector<8xf32>
    %172 = vector.multi_reduction <add>, %171, %cst_50 [1] : vector<8x8xf32> to vector<8xf32>
    %173 = vector.shape_cast %172 : vector<8xf32> to vector<8x1xf32>
    %174 = vector.broadcast %173 : vector<8x1xf32> to vector<8x8xf32>
    %175 = arith.divf %171, %174 : vector<8x8xf32>
    %176 = arith.truncf %175 : vector<8x8xf32> to vector<8x8xbf16>
    %cst_51 = arith.constant dense<0.000000e+00> : vector<8x8xf32>
    %177 = tpu.matmul %176, %163, %cst_51 {dimension_numbers = #tpu.dot_dimension_numbers<[1], [0], [0], [1], [0, 0, 1, 1], [], []>} : vector<8x8xbf16>, vector<8x8xbf16>, vector<8x8xf32> -> vector<8x8xf32>
    %178 = vector.extract_strided_slice %35 {offsets = [8, 72], sizes = [8, 8], strides = [1, 1]} : vector<16x96xf32> to vector<8x8xf32>
    %179 = arith.truncf %178 : vector<8x8xf32> to vector<8x8xbf16>
    %180 = vector.extract_strided_slice %35 {offsets = [8, 80], sizes = [8, 8], strides = [1, 1]} : vector<16x96xf32> to vector<8x8xf32>
    %181 = arith.truncf %180 : vector<8x8xf32> to vector<8x8xbf16>
    %182 = vector.extract_strided_slice %35 {offsets = [8, 88], sizes = [8, 8], strides = [1, 1]} : vector<16x96xf32> to vector<8x8xf32>
    %183 = arith.truncf %182 : vector<8x8xf32> to vector<8x8xbf16>
    %cst_52 = arith.constant dense<0.000000e+00> : vector<8x8xf32>
    %184 = tpu.matmul %179, %181, %cst_52 {dimension_numbers = #tpu.dot_dimension_numbers<[1], [1], [0], [0], [0, 0, 1, 0], [], []>} : vector<8x8xbf16>, vector<8x8xbf16>, vector<8x8xf32> -> vector<8x8xf32>
    %cst_53 = arith.constant 0.353553385 : f32
    %185 = vector.broadcast %cst_53 : f32 to vector<8x8xf32>
    %186 = arith.mulf %184, %185 : vector<8x8xf32>
    %cst_54 = arith.constant dense<0xFF800000> : vector<8xf32>
    %187 = vector.multi_reduction <maximumf>, %186, %cst_54 [1] : vector<8x8xf32> to vector<8xf32>
    %188 = vector.shape_cast %187 : vector<8xf32> to vector<8x1xf32>
    %189 = vector.broadcast %188 : vector<8x1xf32> to vector<8x8xf32>
    %190 = arith.subf %186, %189 : vector<8x8xf32>
    %191 = math.exp %190 : vector<8x8xf32>
    %cst_55 = arith.constant dense<0.000000e+00> : vector<8xf32>
    %192 = vector.multi_reduction <add>, %191, %cst_55 [1] : vector<8x8xf32> to vector<8xf32>
    %193 = vector.shape_cast %192 : vector<8xf32> to vector<8x1xf32>
    %194 = vector.broadcast %193 : vector<8x1xf32> to vector<8x8xf32>
    %195 = arith.divf %191, %194 : vector<8x8xf32>
    %196 = arith.truncf %195 : vector<8x8xf32> to vector<8x8xbf16>
    %cst_56 = arith.constant dense<0.000000e+00> : vector<8x8xf32>
    %197 = tpu.matmul %196, %183, %cst_56 {dimension_numbers = #tpu.dot_dimension_numbers<[1], [0], [0], [1], [0, 0, 1, 1], [], []>} : vector<8x8xbf16>, vector<8x8xbf16>, vector<8x8xf32> -> vector<8x8xf32>
    %198 = tpu.concatenate %137, %157, %177, %197 in 1 : vector<8x8xf32>, vector<8x8xf32>, vector<8x8xf32>, vector<8x8xf32> -> vector<8x32xf32>
    %199 = tpu.concatenate %135, %155, %175, %195 in 1 : vector<8x8xf32>, vector<8x8xf32>, vector<8x8xf32>, vector<8x8xf32> -> vector<8x32xf32>
    %200 = tpu.concatenate %116, %198 in 0 : vector<8x32xf32>, vector<8x32xf32> -> vector<16x32xf32>
    %201 = arith.truncf %200 : vector<16x32xf32> to vector<16x32xbf16>
    %c0_57 = arith.constant 0 : index
    %c0_58 = arith.constant 0 : index
    %202 = vector.load %arg2[%c0_57, %c0_58] : memref<32x32xbf16, #tpu.memory_space<vmem>>, vector<32x32xbf16>
    %cst_59 = arith.constant dense<0.000000e+00> : vector<16x32xf32>
    %203 = tpu.matmul %201, %202, %cst_59 {dimension_numbers = #tpu.dot_dimension_numbers<[1], [0], [0], [1], [0, 0, 1, 1], [], []>} : vector<16x32xbf16>, vector<32x32xbf16>, vector<16x32xf32> -> vector<16x32xf32>
    %204 = vector.broadcast %4 : vector<1x32xf32> to vector<16x32xf32>
    %205 = arith.addf %203, %204 : vector<16x32xf32>
    %206 = arith.addf %0, %205 : vector<16x32xf32>
    %cst_60 = arith.constant dense<0.000000e+00> : vector<16xf32>
    %207 = vector.multi_reduction <add>, %206, %cst_60 [1] : vector<16x32xf32> to vector<16xf32>
    %208 = vector.shape_cast %207 : vector<16xf32> to vector<16x1xf32>
    %cst_61 = arith.constant 3.200000e+01 : f32
    %209 = vector.broadcast %cst_61 : f32 to vector<16x1xf32>
    %210 = arith.divf %208, %209 : vector<16x1xf32>
    %211 = vector.broadcast %210 : vector<16x1xf32> to vector<16x32xf32>
    %212 = arith.subf %206, %211 : vector<16x32xf32>
    %213 = arith.mulf %212, %212 : vector<16x32xf32>
    %cst_62 = arith.constant dense<0.000000e+00> : vector<16xf32>
    %214 = vector.multi_reduction <add>, %213, %cst_62 [1] : vector<16x32xf32> to vector<16xf32>
    %215 = vector.shape_cast %214 : vector<16xf32> to vector<16x1xf32>
    %cst_63 = arith.constant 3.200000e+01 : f32
    %216 = vector.broadcast %cst_63 : f32 to vector<16x1xf32>
    %217 = arith.divf %215, %216 : vector<16x1xf32>
    %218 = vector.broadcast %210 : vector<16x1xf32> to vector<16x32xf32>
    %219 = arith.subf %206, %218 : vector<16x32xf32>
    %cst_64 = arith.constant 9.99999997E-7 : f32
    %220 = vector.broadcast %cst_64 : f32 to vector<16x1xf32>
    %221 = arith.addf %217, %220 : vector<16x1xf32>
    %222 = math.rsqrt %221 : vector<16x1xf32>
    %223 = vector.broadcast %222 : vector<16x1xf32> to vector<16x32xf32>
    %224 = arith.mulf %219, %223 : vector<16x32xf32>
    %225 = vector.broadcast %5 : vector<1x32xf32> to vector<16x32xf32>
    %226 = arith.mulf %224, %225 : vector<16x32xf32>
    %227 = vector.broadcast %6 : vector<1x32xf32> to vector<16x32xf32>
    %228 = arith.addf %226, %227 : vector<16x32xf32>
    %229 = arith.truncf %228 : vector<16x32xf32> to vector<16x32xbf16>
    %c0_65 = arith.constant 0 : index
    %c0_66 = arith.constant 0 : index
    %230 = vector.load %arg3[%c0_65, %c0_66] : memref<32x64xbf16, #tpu.memory_space<vmem>>, vector<32x64xbf16>
    %cst_67 = arith.constant dense<0.000000e+00> : vector<16x64xf32>
    %231 = tpu.matmul %229, %230, %cst_67 {dimension_numbers = #tpu.dot_dimension_numbers<[1], [0], [0], [1], [0, 0, 1, 1], [], []>} : vector<16x32xbf16>, vector<32x64xbf16>, vector<16x64xf32> -> vector<16x64xf32>
    %232 = vector.broadcast %7 : vector<1x64xf32> to vector<16x64xf32>
    %233 = arith.addf %231, %232 : vector<16x64xf32>
    %234 = arith.mulf %233, %233 : vector<16x64xf32>
    %235 = arith.mulf %233, %234 : vector<16x64xf32>
    %cst_68 = arith.constant 4.471500e-02 : f32
    %236 = vector.broadcast %cst_68 : f32 to vector<16x64xf32>
    %237 = arith.mulf %236, %235 : vector<16x64xf32>
    %238 = arith.addf %233, %237 : vector<16x64xf32>
    %cst_69 = arith.constant 0.797884583 : f32
    %239 = vector.broadcast %cst_69 : f32 to vector<16x64xf32>
    %240 = arith.mulf %239, %238 : vector<16x64xf32>
    %241 = math.tanh %240 : vector<16x64xf32>
    %cst_70 = arith.constant 1.000000e+00 : f32
    %242 = vector.broadcast %cst_70 : f32 to vector<16x64xf32>
    %243 = arith.addf %242, %241 : vector<16x64xf32>
    %cst_71 = arith.constant 5.000000e-01 : f32
    %244 = vector.broadcast %cst_71 : f32 to vector<16x64xf32>
    %245 = arith.mulf %244, %243 : vector<16x64xf32>
    %246 = arith.mulf %233, %245 : vector<16x64xf32>
    %247 = arith.truncf %246 : vector<16x64xf32> to vector<16x64xbf16>
    %c0_72 = arith.constant 0 : index
    %c0_73 = arith.constant 0 : index
    %248 = vector.load %arg4[%c0_72, %c0_73] : memref<64x32xbf16, #tpu.memory_space<vmem>>, vector<64x32xbf16>
    %cst_74 = arith.constant dense<0.000000e+00> : vector<16x32xf32>
    %249 = tpu.matmul %247, %248, %cst_74 {dimension_numbers = #tpu.dot_dimension_numbers<[1], [0], [0], [1], [0, 0, 1, 1], [], []>} : vector<16x64xbf16>, vector<64x32xbf16>, vector<16x32xf32> -> vector<16x32xf32>
    %250 = vector.broadcast %8 : vector<1x32xf32> to vector<16x32xf32>
    %251 = arith.addf %249, %250 : vector<16x32xf32>
    %252 = arith.addf %206, %251 : vector<16x32xf32>
    %253 = tpu.concatenate %117, %199 in 0 : vector<8x32xf32>, vector<8x32xf32> -> vector<16x32xf32>
    %254 = tpu.concatenate %252, %253 in 1 : vector<16x32xf32>, vector<16x32xf32> -> vector<16x64xf32>
    %c0_75 = arith.constant 0 : index
    %c0_76 = arith.constant 0 : index
    %255 = vector.load %arg6[%c0_75, %c0_76] : memref<16x64xf32, #tpu.memory_space<vmem>>, vector<16x64xf32>
    tpu.vector_store %arg6[%c0_75, %c0_76], %254 {strides = array<i32>} : memref<16x64xf32, #tpu.memory_space<vmem>>, vector<16x64xf32>,
    return
  }
}

</mosaic_0001>

<llo_original>
// kernel: encoder_forward.1
$region0: #{encoder_forward.1}
  #allocation0 [shape = 'u32[]', space=smem, size = 0x4, offset = 0x4, fixed_abs, tag = 'smem constant byte address 0x4 - core index']
  #allocation1 [shape = 'u32[144,128]{1,0:T(1,128)}', space=vmem, size = 0x12000, scoped, tag = 'internal scratch']
  %s0 = inlined_call_operand.vmem [shape: f32[16,32], index: 0, kind: input, shape index: {}]
  %s1 = inlined_call_operand.vmem [shape: bf16[32,96], index: 1, kind: input, shape index: {}]
  %s2 = inlined_call_operand.vmem [shape: bf16[32,32], index: 2, kind: input, shape index: {}]
  %s3 = inlined_call_operand.vmem [shape: bf16[32,64], index: 3, kind: input, shape index: {}]
  %s4 = inlined_call_operand.vmem [shape: bf16[64,32], index: 4, kind: input, shape index: {}]
  %s5 = inlined_call_operand.vmem [shape: f32[8,96], index: 5, kind: input, shape index: {}]
  %s6 = inlined_call_operand.vmem [shape: f32[16,64], index: 6, kind: output, shape index: {}]
  %s7 = sld [smem:[#allocation0]]
  $region34: #{encoder_forward.1} parent=0
    _
  %s9 = ssub.s32 1, %s7
  %s10 = scalar_select 0, %s9, %s7
  // Predicated region
  $region2: #{encoder_forward.1} parent=0 // pred_check
    _
  $region3: #{encoder_forward.1} parent=0 // pred_check_branch
    %12 = sbr.rel (0) target = $region5
  $region4: #{encoder_forward.1} parent=0 // pred_region
    _
  $region5: #{encoder_forward.1} parent=0 // pred_fallthru
    _
  // Predicated region
  $region6: #{encoder_forward.1} parent=0 // pred_check
    _
  $region7: #{encoder_forward.1} parent=0 // pred_check_branch
    %14 = sbr.rel (0) target = $region9
  $region8: #{encoder_forward.1} parent=0 // pred_region
    _
  $region9: #{encoder_forward.1} parent=0 // pred_fallthru
    _
  // Predicated region
  $region10: #{encoder_forward.1} parent=0 // pred_check
    _
  $region11: #{encoder_forward.1} parent=0 // pred_check_branch
    %16 = sbr.rel (0) target = $region13
  $region12: #{encoder_forward.1} parent=0 // pred_region
    _
  $region13: #{encoder_forward.1} parent=0 // pred_fallthru
    _
  // Predicated region
  $region14: #{encoder_forward.1} parent=0 // pred_check
    _
  $region15: #{encoder_forward.1} parent=0 // pred_check_branch
    %18 = sbr.rel (0) target = $region17
  $region16: #{encoder_forward.1} parent=0 // pred_region
    _
  $region17: #{encoder_forward.1} parent=0 // pred_fallthru
    _
  // Predicated region
  $region18: #{encoder_forward.1} parent=0 // pred_check
    _
  $region19: #{encoder_forward.1} parent=0 // pred_check_branch
    %20 = sbr.rel (0) target = $region21
  $region20: #{encoder_forward.1} parent=0 // pred_region
    _
  $region21: #{encoder_forward.1} parent=0 // pred_fallthru
    _
  // Predicated region
  $region22: #{encoder_forward.1} parent=0 // pred_check
    _
  $region23: #{encoder_forward.1} parent=0 // pred_check_branch
    %22 = sbr.rel (0) target = $region25
  $region24: #{encoder_forward.1} parent=0 // pred_region
    _
  $region25: #{encoder_forward.1} parent=0 // pred_fallthru
    _
  %v24 = vld [vmem:[%s0] sm:$0xff]
  %v25 = vld [vmem:[%s0 + $0x8] sm:$0xff]
  %v26 = vld [vmem:[%s5] sm:$0x1]
  %v27 = vld [vmem:[%s5 + $0x1] sm:$0x1]
  %v28 = vld [vmem:[%s5 + $0x2] sm:$0x1]
  %v29 = vld [vmem:[%s5 + $0x3] sm:$0x1]
  %v30 = vld [vmem:[%s5 + $0x4] sm:$0x1]
  %v31 = vld [vmem:[%s5 + $0x5] sm:$0x1]
  %v32 = vld [vmem:[%s5 + $0x6] sm:$0x1]
  %v33 = vld [vmem:[%s5 + $0x7] sm:$0x1]
  %vm34 = vcmask 261120
  %v35 = vsel %vm34, %v24, 0.0
  %36 = vadd.xlane.f32.xlu0 %v35
  %v37 = vpop.xlane.xlu0 %36
  %v38 = vsel %vm34, %v25, 0.0
  %39 = vadd.xlane.f32.xlu0 %v38
  %v40 = vpop.xlane.xlu0 %39
  %v41 = vrcp.pop 32.0
  %v42 = vmul.f32 %v37, %v41
  %v43 = vmul.f32 %v40, %v41
  %v44 = vsub.f32 %v24, %v42
  %v45 = vsub.f32 %v25, %v43
  %v46 = vmul.f32 %v44, %v44
  %v47 = vmul.f32 %v45, %v45
  %v48 = vsel %vm34, %v46, 0.0
  %49 = vadd.xlane.f32.xlu0 %v48
  %v50 = vpop.xlane.xlu0 %49
  %v51 = vsel %vm34, %v47, 0.0
  %52 = vadd.xlane.f32.xlu0 %v51
  %v53 = vpop.xlane.xlu0 %52
  %v54 = vmul.f32 %v50, %v41
  %v55 = vmul.f32 %v53, %v41
  %v56 = vadd.f32 %v54, 1e-06
  %v57 = vadd.f32 %v55, 1e-06
  %v58 = vrsqrt.pop %v56
  %v59 = vrsqrt.pop %v57
  %v60 = vmul.f32 %v44, %v58
  %v61 = vmul.f32 %v45, %v59
  %v62 = vlaneseq
  %v63 = vshrl.u32 %v62, 7
  %v64 = vsub.s32 0, %v63
  %v65 = vrot.slane %v26, %v64
  %v66 = vmul.f32 %v60, %v65
  %v67 = vmul.f32 %v61, %v65
  %v68 = vlaneseq
  %v69 = vshrl.u32 %v68, 7
  %v70 = vsub.s32 0, %v69
  %v71 = vrot.slane %v27, %v70
  %v72 = vadd.f32 %v66, %v71
  %v73 = vadd.f32 %v67, %v71
  %v74 = vpack.c.bf16 %v73, %v72
  %v75 = vld [vmem:[%s1] sm:$0xf]
  %v76 = vld [vmem:[%s1 + $0x4] sm:$0xf]
  %v77 = vld [vmem:[%s1 + $0x8] sm:$0xf]
  %v78 = vld [vmem:[%s1 + $0xc] sm:$0xf]
  %v79 = vlaneseq
  %v80 = vshrl.u32 %v79, 7
  %v81 = vsub.s32 0, %v80
  %v82 = vrot.slane %v28, %v81
  %v87 = vunpack.c.l.b16 %v75
  %v88 = vunpack.c.l.b16 %v76
  %v89 = vunpack.c.l.b16 %v77
  %v90 = vunpack.c.l.b16 %v78
  %v91 = vpack.c.b16 %v88, %v87
  %v92 = vpack.c.b16 %v90, %v89
  %v96 = vsel %vm34, %v74, 0
  %98 = vmatprep.subr.bf16.mxu0 0
  %99 = vmatpush1.bf16.msra.mxu0 %v91
  %100 = vmatprep.subr.bf16.mxu0 0
  %101 = vmatpush1.bf16.msra.mxu0 %v92
  %102 = vmatprep.subr.bf16.mxu0 0
  %103 = vmatpush1.bf16.msra.mxu0 0
  %104 = vmatprep.subr.bf16.mxu0 0
  %105 = vmatpush1.bf16.msra.mxu0 0
  %106 = vmatprep.subr.bf16.mxu0 0
  %107 = vmatpush1.bf16.msra.mxu0 0
  %108 = vmatprep.subr.bf16.mxu0 0
  %109 = vmatpush1.bf16.msra.mxu0 0
  %110 = vmatprep.subr.bf16.mxu0 0
  %111 = vmatpush1.bf16.msra.mxu0 0
  %112 = vmatprep.subr.bf16.mxu0 0
  %113 = vmatpush1.bf16.msra.mxu0 0
  %114 = vmatprep.subr.bf16.mxu0 0
  %115 = vmatpush1.bf16.msra.mxu0 0
  %116 = vmatprep.subr.bf16.mxu0 0
  %117 = vmatpush1.bf16.msra.mxu0 0
  %118 = vmatprep.subr.bf16.mxu0 0
  %119 = vmatpush1.bf16.msra.mxu0 0
  %120 = vmatprep.subr.bf16.mxu0 0
  %121 = vmatpush1.bf16.msra.mxu0 0
  %122 = vmatprep.subr.bf16.mxu0 0
  %123 = vmatpush1.bf16.msra.mxu0 0
  %124 = vmatprep.subr.bf16.mxu0 0
  %125 = vmatpush1.bf16.msra.mxu0 0
  %126 = vmatprep.subr.bf16.mxu0 0
  %127 = vmatpush1.bf16.msra.mxu0 0
  %128 = vmatprep.subr.bf16.mxu0 0
  %129 = vmatpush1.bf16.msra.mxu0 0
  %130 = vmatprep.mubr.bf16.mxu0 0
  %131 = vmatmul.mubr.bf16.gmra.mrb[0].mxu0 %v96
  %v132 = vpop.f32.mrb[0].mxu0
  %v133 = vadd.f32 %v82, %v132
  %v134 = vpop.f32.mrb[0].mxu0
  %v135 = vpop.f32.mrb[0].mxu0
  %v136 = vadd.f32 %v82, %v135
  %v137 = vpop.f32.mrb[0].mxu0
  %138 = vdwg.mxu0
  %v139 = vpack.c.bf16 %v133, %v133
  %141 = vrot.lane.b32.xlu0 %v139, 120
  %v142 = vpop.permute.xlu0 %141
  %vm143 = vcmask 64512
  %v145 = vsel %vm143, %v139, 0
  %v148 = vsel %vm143, %v142, 0
  %150 = vmatprep.subr.bf16.mxu0 0
  %151 = vmatpush1.bf16.xpose.msra.mxu0 %v148
  %152 = vmatprep.subr.bf16.mxu0 0
  %153 = vmatpush1.bf16.xpose.msra.mxu0 0
  %154 = vmatprep.subr.bf16.mxu0 0
  %155 = vmatpush1.bf16.xpose.msra.mxu0 0
  %156 = vmatprep.subr.bf16.mxu0 0
  %157 = vmatpush1.bf16.xpose.msra.mxu0 0
  %158 = vmatprep.subr.bf16.mxu0 0
  %159 = vmatpush1.bf16.xpose.msra.mxu0 0
  %160 = vmatprep.subr.bf16.mxu0 0
  %161 = vmatpush1.bf16.xpose.msra.mxu0 0
  %162 = vmatprep.subr.bf16.mxu0 0
  %163 = vmatpush1.bf16.xpose.msra.mxu0 0
  %164 = vmatprep.subr.bf16.mxu0 0
  %165 = vmatpush1.bf16.xpose.msra.mxu0 0
  %166 = vmatprep.subr.bf16.mxu0 0
  %167 = vmatpush1.bf16.xpose.msra.mxu0 0
  %168 = vmatprep.subr.bf16.mxu0 0
  %169 = vmatpush1.bf16.xpose.msra.mxu0 0
  %170 = vmatprep.subr.bf16.mxu0 0
  %171 = vmatpush1.bf16.xpose.msra.mxu0 0
  %172 = vmatprep.subr.bf16.mxu0 0
  %173 = vmatpush1.bf16.xpose.msra.mxu0 0
  %174 = vmatprep.subr.bf16.mxu0 0
  %175 = vmatpush1.bf16.xpose.msra.mxu0 0
  %176 = vmatprep.subr.bf16.mxu0 0
  %177 = vmatpush1.bf16.xpose.msra.mxu0 0
  %178 = vmatprep.subr.bf16.mxu0 0
  %179 = vmatpush1.bf16.xpose.msra.mxu0 0
  %180 = vmatprep.subr.bf16.mxu0 0
  %181 = vmatpush1.bf16.xpose.msra.mxu0 0
  %182 = vmatprep.mubr.bf16.mxu0 0
  %183 = vmatmul.mubr.bf16.gmra.mrb[0].mxu0 %v145
  %v184 = vpop.f32.mrb[0].mxu0
  %v185 = vadd.f32 0.0, %v184
  %v186 = vpop.f32.mrb[0].mxu0
  %v187 = vpop.f32.mrb[0].mxu0
  %v188 = vpop.f32.mrb[0].mxu0
  %189 = vdwg.mxu0
  %v190 = vmul.f32 %v185, 0.35355338
  %v191 = vsel %vm143, %v190, -inf
  %192 = vmax.xlane.f32.xlu0 %v191
  %v193 = vpop.xlane.xlu0 %192
  %v194 = vsub.f32 %v190, %v193
  %v195 = vmul.f32 %v194, 1.442695
  %v196 = vpow.pop %v195
  %v197 = vsel %vm143, %v196, 0.0
  %198 = vadd.xlane.f32.xlu0 %v197
  %v199 = vpop.xlane.xlu0 %198
  %v200 = vrcp.pop %v199
  %v201 = vmul.f32 %v196, %v200
  %v202 = vpack.c.bf16 %v201, %v201
  %203 = vrot.lane.b32.xlu0 %v139, 112
  %v204 = vpop.permute.xlu0 %203
  %v206 = vsel %vm143, %v202, 0
  %vm208 = vcmask 1043456
  %v210 = vsel %vm208, %v204, 0
  %212 = vmatprep.subr.bf16.mxu0 0
  %213 = vmatpush1.bf16.msra.mxu0 %v210
  %214 = vmatprep.subr.bf16.mxu0 0
  %215 = vmatpush1.bf16.msra.mxu0 0
  %216 = vmatprep.subr.bf16.mxu0 0
  %217 = vmatpush1.bf16.msra.mxu0 0
  %218 = vmatprep.subr.bf16.mxu0 0
  %219 = vmatpush1.bf16.msra.mxu0 0
  %220 = vmatprep.subr.bf16.mxu0 0
  %221 = vmatpush1.bf16.msra.mxu0 0
  %222 = vmatprep.subr.bf16.mxu0 0
  %223 = vmatpush1.bf16.msra.mxu0 0
  %224 = vmatprep.subr.bf16.mxu0 0
  %225 = vmatpush1.bf16.msra.mxu0 0
  %226 = vmatprep.subr.bf16.mxu0 0
  %227 = vmatpush1.bf16.msra.mxu0 0
  %228 = vmatprep.subr.bf16.mxu0 0
  %229 = vmatpush1.bf16.msra.mxu0 0
  %230 = vmatprep.subr.bf16.mxu0 0
  %231 = vmatpush1.bf16.msra.mxu0 0
  %232 = vmatprep.subr.bf16.mxu0 0
  %233 = vmatpush1.bf16.msra.mxu0 0
  %234 = vmatprep.subr.bf16.mxu0 0
  %235 = vmatpush1.bf16.msra.mxu0 0
  %236 = vmatprep.subr.bf16.mxu0 0
  %237 = vmatpush1.bf16.msra.mxu0 0
  %238 = vmatprep.subr.bf16.mxu0 0
  %239 = vmatpush1.bf16.msra.mxu0 0
  %240 = vmatprep.subr.bf16.mxu0 0
  %241 = vmatpush1.bf16.msra.mxu0 0
  %242 = vmatprep.subr.bf16.mxu0 0
  %243 = vmatpush1.bf16.msra.mxu0 0
  %244 = vmatprep.mubr.bf16.mxu0 0
  %245 = vmatmul.mubr.bf16.gmra.mrb[0].mxu0 %v206
  %v246 = vpop.f32.mrb[0].mxu0
  %v247 = vadd.f32 0.0, %v246
  %v248 = vpop.f32.mrb[0].mxu0
  %v249 = vpop.f32.mrb[0].mxu0
  %v250 = vpop.f32.mrb[0].mxu0
  %251 = vdwg.mxu0
  %252 = vrot.lane.b32.xlu0 %v139, 104
  %v253 = vpop.permute.xlu0 %252
  %254 = vrot.lane.b32.xlu0 %v139, 96
  %v255 = vpop.permute.xlu0 %254
  %v257 = vsel %vm143, %v253, 0
  %v260 = vsel %vm143, %v255, 0
  %262 = vmatprep.subr.bf16.mxu0 0
  %263 = vmatpush1.bf16.xpose.msra.mxu0 %v260
  %264 = vmatprep.subr.bf16.mxu0 0
  %265 = vmatpush1.bf16.xpose.msra.mxu0 0
  %266 = vmatprep.subr.bf16.mxu0 0
  %267 = vmatpush1.bf16.xpose.msra.mxu0 0
  %268 = vmatprep.subr.bf16.mxu0 0
  %269 = vmatpush1.bf16.xpose.msra.mxu0 0
  %270 = vmatprep.subr.bf16.mxu0 0
  %271 = vmatpush1.bf16.xpose.msra.mxu0 0
  %272 = vmatprep.subr.bf16.mxu0 0
  %273 = vmatpush1.bf16.xpose.msra.mxu0 0
  %274 = vmatprep.subr.bf16.mxu0 0
  %275 = vmatpush1.bf16.xpose.msra.mxu0 0
  %276 = vmatprep.subr.bf16.mxu0 0
  %277 = vmatpush1.bf16.xpose.msra.mxu0 0
  %278 = vmatprep.subr.bf16.mxu0 0
  %279 = vmatpush1.bf16.xpose.msra.mxu0 0
  %280 = vmatprep.subr.bf16.mxu0 0
  %281 = vmatpush1.bf16.xpose.msra.mxu0 0
  %282 = vmatprep.subr.bf16.mxu0 0
  %283 = vmatpush1.bf16.xpose.msra.mxu0 0
  %284 = vmatprep.subr.bf16.mxu0 0
  %285 = vmatpush1.bf16.xpose.msra.mxu0 0
  %286 = vmatprep.subr.bf16.mxu0 0
  %287 = vmatpush1.bf16.xpose.msra.mxu0 0
  %288 = vmatprep.subr.bf16.mxu0 0
  %289 = vmatpush1.bf16.xpose.msra.mxu0 0
  %290 = vmatprep.subr.bf16.mxu0 0
  %291 = vmatpush1.bf16.xpose.msra.mxu0 0
  %292 = vmatprep.subr.bf16.mxu0 0
  %293 = vmatpush1.bf16.xpose.msra.mxu0 0
  %294 = vmatprep.mubr.bf16.mxu0 0
  %295 = vmatmul.mubr.bf16.gmra.mrb[0].mxu0 %v257
  %v296 = vpop.f32.mrb[0].mxu0
  %v297 = vadd.f32 0.0, %v296
  %v298 = vpop.f32.mrb[0].mxu0
  %v299 = vpop.f32.mrb[0].mxu0
  %v300 = vpop.f32.mrb[0].mxu0
  %301 = vdwg.mxu0
  %v302 = vmul.f32 %v297, 0.35355338
  %v303 = vsel %vm143, %v302, -inf
  %304 = vmax.xlane.f32.xlu0 %v303
  %v305 = vpop.xlane.xlu0 %304
  %v306 = vsub.f32 %v302, %v305
  %v307 = vmul.f32 %v306, 1.442695
  %v308 = vpow.pop %v307
  %v309 = vsel %vm143, %v308, 0.0
  %310 = vadd.xlane.f32.xlu0 %v309
  %v311 = vpop.xlane.xlu0 %310
  %v312 = vrcp.pop %v311
  %v313 = vmul.f32 %v308, %v312
  %v314 = vpack.c.bf16 %v313, %v313
  %315 = vrot.lane.b32.xlu0 %v139, 88
  %v316 = vpop.permute.xlu0 %315
  %v318 = vsel %vm143, %v314, 0
  %v321 = vsel %vm208, %v316, 0
  %323 = vmatprep.subr.bf16.mxu0 0
  %324 = vmatpush1.bf16.msra.mxu0 %v321
  %325 = vmatprep.subr.bf16.mxu0 0
  %326 = vmatpush1.bf16.msra.mxu0 0
  %327 = vmatprep.subr.bf16.mxu0 0
  %328 = vmatpush1.bf16.msra.mxu0 0
  %329 = vmatprep.subr.bf16.mxu0 0
  %330 = vmatpush1.bf16.msra.mxu0 0
  %331 = vmatprep.subr.bf16.mxu0 0
  %332 = vmatpush1.bf16.msra.mxu0 0
  %333 = vmatprep.subr.bf16.mxu0 0
  %334 = vmatpush1.bf16.msra.mxu0 0
  %335 = vmatprep.subr.bf16.mxu0 0
  %336 = vmatpush1.bf16.msra.mxu0 0
  %337 = vmatprep.subr.bf16.mxu0 0
  %338 = vmatpush1.bf16.msra.mxu0 0
  %339 = vmatprep.subr.bf16.mxu0 0
  %340 = vmatpush1.bf16.msra.mxu0 0
  %341 = vmatprep.subr.bf16.mxu0 0
  %342 = vmatpush1.bf16.msra.mxu0 0
  %343 = vmatprep.subr.bf16.mxu0 0
  %344 = vmatpush1.bf16.msra.mxu0 0
  %345 = vmatprep.subr.bf16.mxu0 0
  %346 = vmatpush1.bf16.msra.mxu0 0
  %347 = vmatprep.subr.bf16.mxu0 0
  %348 = vmatpush1.bf16.msra.mxu0 0
  %349 = vmatprep.subr.bf16.mxu0 0
  %350 = vmatpush1.bf16.msra.mxu0 0
  %351 = vmatprep.subr.bf16.mxu0 0
  %352 = vmatpush1.bf16.msra.mxu0 0
  %353 = vmatprep.subr.bf16.mxu0 0
  %354 = vmatpush1.bf16.msra.mxu0 0
  %355 = vmatprep.mubr.bf16.mxu0 0
  %356 = vmatmul.mubr.bf16.gmra.mrb[0].mxu0 %v318
  %v357 = vpop.f32.mrb[0].mxu0
  %v358 = vadd.f32 0.0, %v357
  %v359 = vpop.f32.mrb[0].mxu0
  %v360 = vpop.f32.mrb[0].mxu0
  %v361 = vpop.f32.mrb[0].mxu0
  %362 = vdwg.mxu0
  %363 = vrot.lane.b32.xlu0 %v139, 80
  %v364 = vpop.permute.xlu0 %363
  %365 = vrot.lane.b32.xlu0 %v139, 72
  %v366 = vpop.permute.xlu0 %365
  %v368 = vsel %vm143, %v364, 0
  %v371 = vsel %vm143, %v366, 0
  %373 = vmatprep.subr.bf16.mxu0 0
  %374 = vmatpush1.bf16.xpose.msra.mxu0 %v371
  %375 = vmatprep.subr.bf16.mxu0 0
  %376 = vmatpush1.bf16.xpose.msra.mxu0 0
  %377 = vmatprep.subr.bf16.mxu0 0
  %378 = vmatpush1.bf16.xpose.msra.mxu0 0
  %379 = vmatprep.subr.bf16.mxu0 0
  %380 = vmatpush1.bf16.xpose.msra.mxu0 0
  %381 = vmatprep.subr.bf16.mxu0 0
  %382 = vmatpush1.bf16.xpose.msra.mxu0 0
  %383 = vmatprep.subr.bf16.mxu0 0
  %384 = vmatpush1.bf16.xpose.msra.mxu0 0
  %385 = vmatprep.subr.bf16.mxu0 0
  %386 = vmatpush1.bf16.xpose.msra.mxu0 0
  %387 = vmatprep.subr.bf16.mxu0 0
  %388 = vmatpush1.bf16.xpose.msra.mxu0 0
  %389 = vmatprep.subr.bf16.mxu0 0
  %390 = vmatpush1.bf16.xpose.msra.mxu0 0
  %391 = vmatprep.subr.bf16.mxu0 0
  %392 = vmatpush1.bf16.xpose.msra.mxu0 0
  %393 = vmatprep.subr.bf16.mxu0 0
  %394 = vmatpush1.bf16.xpose.msra.mxu0 0
  %395 = vmatprep.subr.bf16.mxu0 0
  %396 = vmatpush1.bf16.xpose.msra.mxu0 0
  %397 = vmatprep.subr.bf16.mxu0 0
  %398 = vmatpush1.bf16.xpose.msra.mxu0 0
  %399 = vmatprep.subr.bf16.mxu0 0
  %400 = vmatpush1.bf16.xpose.msra.mxu0 0
  %401 = vmatprep.subr.bf16.mxu0 0
  %402 = vmatpush1.bf16.xpose.msra.mxu0 0
  %403 = vmatprep.subr.bf16.mxu0 0
  %404 = vmatpush1.bf16.xpose.msra.mxu0 0
  %405 = vmatprep.mubr.bf16.mxu0 0
  %406 = vmatmul.mubr.bf16.gmra.mrb[0].mxu0 %v368
  %v407 = vpop.f32.mrb[0].mxu0
  %v408 = vadd.f32 0.0, %v407
  %v409 = vpop.f32.mrb[0].mxu0
  %v410 = vpop.f32.mrb[0].mxu0
  %v411 = vpop.f32.mrb[0].mxu0
  %412 = vdwg.mxu0
  %v413 = vmul.f32 %v408, 0.35355338
  %v414 = vsel %vm143, %v413, -inf
  %415 = vmax.xlane.f32.xlu0 %v414
  %v416 = vpop.xlane.xlu0 %415
  %v417 = vsub.f32 %v413, %v416
  %v418 = vmul.f32 %v417, 1.442695
  %v419 = vpow.pop %v418
  %v420 = vsel %vm143, %v419, 0.0
  %421 = vadd.xlane.f32.xlu0 %v420
  %v422 = vpop.xlane.xlu0 %421
  %v423 = vrcp.pop %v422
  %v424 = vmul.f32 %v419, %v423
  %v425 = vpack.c.bf16 %v424, %v424
  %426 = vrot.lane.b32.xlu0 %v139, 64
  %v427 = vpop.permute.xlu0 %426
  %v429 = vsel %vm143, %v425, 0
  %v432 = vsel %vm208, %v427, 0
  %434 = vmatprep.subr.bf16.mxu0 0
  %435 = vmatpush1.bf16.msra.mxu0 %v432
  %436 = vmatprep.subr.bf16.mxu0 0
  %437 = vmatpush1.bf16.msra.mxu0 0
  %438 = vmatprep.subr.bf16.mxu0 0
  %439 = vmatpush1.bf16.msra.mxu0 0
  %440 = vmatprep.subr.bf16.mxu0 0
  %441 = vmatpush1.bf16.msra.mxu0 0
  %442 = vmatprep.subr.bf16.mxu0 0
  %443 = vmatpush1.bf16.msra.mxu0 0
  %444 = vmatprep.subr.bf16.mxu0 0
  %445 = vmatpush1.bf16.msra.mxu0 0
  %446 = vmatprep.subr.bf16.mxu0 0
  %447 = vmatpush1.bf16.msra.mxu0 0
  %448 = vmatprep.subr.bf16.mxu0 0
  %449 = vmatpush1.bf16.msra.mxu0 0
  %450 = vmatprep.subr.bf16.mxu0 0
  %451 = vmatpush1.bf16.msra.mxu0 0
  %452 = vmatprep.subr.bf16.mxu0 0
  %453 = vmatpush1.bf16.msra.mxu0 0
  %454 = vmatprep.subr.bf16.mxu0 0
  %455 = vmatpush1.bf16.msra.mxu0 0
  %456 = vmatprep.subr.bf16.mxu0 0
  %457 = vmatpush1.bf16.msra.mxu0 0
  %458 = vmatprep.subr.bf16.mxu0 0
  %459 = vmatpush1.bf16.msra.mxu0 0
  %460 = vmatprep.subr.bf16.mxu0 0
  %461 = vmatpush1.bf16.msra.mxu0 0
  %462 = vmatprep.subr.bf16.mxu0 0
  %463 = vmatpush1.bf16.msra.mxu0 0
  %464 = vmatprep.subr.bf16.mxu0 0
  %465 = vmatpush1.bf16.msra.mxu0 0
  %466 = vmatprep.mubr.bf16.mxu0 0
  %467 = vmatmul.mubr.bf16.gmra.mrb[0].mxu0 %v429
  %v468 = vpop.f32.mrb[0].mxu0
  %v469 = vadd.f32 0.0, %v468
  %v470 = vpop.f32.mrb[0].mxu0
  %v471 = vpop.f32.mrb[0].mxu0
  %v472 = vpop.f32.mrb[0].mxu0
  %473 = vdwg.mxu0
  %474 = vrot.lane.b32.xlu0 %v139, 56
  %v475 = vpop.permute.xlu0 %474
  %476 = vrot.lane.b32.xlu0 %v139, 48
  %v477 = vpop.permute.xlu0 %476
  %v479 = vsel %vm143, %v475, 0
  %v482 = vsel %vm143, %v477, 0
  %484 = vmatprep.subr.bf16.mxu0 0
  %485 = vmatpush1.bf16.xpose.msra.mxu0 %v482
  %486 = vmatprep.subr.bf16.mxu0 0
  %487 = vmatpush1.bf16.xpose.msra.mxu0 0
  %488 = vmatprep.subr.bf16.mxu0 0
  %489 = vmatpush1.bf16.xpose.msra.mxu0 0
  %490 = vmatprep.subr.bf16.mxu0 0
  %491 = vmatpush1.bf16.xpose.msra.mxu0 0
  %492 = vmatprep.subr.bf16.mxu0 0
  %493 = vmatpush1.bf16.xpose.msra.mxu0 0
  %494 = vmatprep.subr.bf16.mxu0 0
  %495 = vmatpush1.bf16.xpose.msra.mxu0 0
  %496 = vmatprep.subr.bf16.mxu0 0
  %497 = vmatpush1.bf16.xpose.msra.mxu0 0
  %498 = vmatprep.subr.bf16.mxu0 0
  %499 = vmatpush1.bf16.xpose.msra.mxu0 0
  %500 = vmatprep.subr.bf16.mxu0 0
  %501 = vmatpush1.bf16.xpose.msra.mxu0 0
  %502 = vmatprep.subr.bf16.mxu0 0
  %503 = vmatpush1.bf16.xpose.msra.mxu0 0
  %504 = vmatprep.subr.bf16.mxu0 0
  %505 = vmatpush1.bf16.xpose.msra.mxu0 0
  %506 = vmatprep.subr.bf16.mxu0 0
  %507 = vmatpush1.bf16.xpose.msra.mxu0 0
  %508 = vmatprep.subr.bf16.mxu0 0
  %509 = vmatpush1.bf16.xpose.msra.mxu0 0
  %510 = vmatprep.subr.bf16.mxu0 0
  %511 = vmatpush1.bf16.xpose.msra.mxu0 0
  %512 = vmatprep.subr.bf16.mxu0 0
  %513 = vmatpush1.bf16.xpose.msra.mxu0 0
  %514 = vmatprep.subr.bf16.mxu0 0
  %515 = vmatpush1.bf16.xpose.msra.mxu0 0
  %516 = vmatprep.mubr.bf16.mxu0 0
  %517 = vmatmul.mubr.bf16.gmra.mrb[0].mxu0 %v479
  %v518 = vpop.f32.mrb[0].mxu0
  %v519 = vadd.f32 0.0, %v518
  %v520 = vpop.f32.mrb[0].mxu0
  %v521 = vpop.f32.mrb[0].mxu0
  %v522 = vpop.f32.mrb[0].mxu0
  %523 = vdwg.mxu0
  %v524 = vmul.f32 %v519, 0.35355338
  %v525 = vsel %vm143, %v524, -inf
  %526 = vmax.xlane.f32.xlu0 %v525
  %v527 = vpop.xlane.xlu0 %526
  %v528 = vsub.f32 %v524, %v527
  %v529 = vmul.f32 %v528, 1.442695
  %v530 = vpow.pop %v529
  %v531 = vsel %vm143, %v530, 0.0
  %532 = vadd.xlane.f32.xlu0 %v531
  %v533 = vpop.xlane.xlu0 %532
  %v534 = vrcp.pop %v533
  %v535 = vmul.f32 %v530, %v534
  %v536 = vpack.c.bf16 %v535, %v535
  %537 = vrot.lane.b32.xlu0 %v139, 40
  %v538 = vpop.permute.xlu0 %537
  %v540 = vsel %vm143, %v536, 0
  %v543 = vsel %vm208, %v538, 0
  %545 = vmatprep.subr.bf16.mxu0 0
  %546 = vmatpush1.bf16.msra.mxu0 %v543
  %547 = vmatprep.subr.bf16.mxu0 0
  %548 = vmatpush1.bf16.msra.mxu0 0
  %549 = vmatprep.subr.bf16.mxu0 0
  %550 = vmatpush1.bf16.msra.mxu0 0
  %551 = vmatprep.subr.bf16.mxu0 0
  %552 = vmatpush1.bf16.msra.mxu0 0
  %553 = vmatprep.subr.bf16.mxu0 0
  %554 = vmatpush1.bf16.msra.mxu0 0
  %555 = vmatprep.subr.bf16.mxu0 0
  %556 = vmatpush1.bf16.msra.mxu0 0
  %557 = vmatprep.subr.bf16.mxu0 0
  %558 = vmatpush1.bf16.msra.mxu0 0
  %559 = vmatprep.subr.bf16.mxu0 0
  %560 = vmatpush1.bf16.msra.mxu0 0
  %561 = vmatprep.subr.bf16.mxu0 0
  %562 = vmatpush1.bf16.msra.mxu0 0
  %563 = vmatprep.subr.bf16.mxu0 0
  %564 = vmatpush1.bf16.msra.mxu0 0
  %565 = vmatprep.subr.bf16.mxu0 0
  %566 = vmatpush1.bf16.msra.mxu0 0
  %567 = vmatprep.subr.bf16.mxu0 0
  %568 = vmatpush1.bf16.msra.mxu0 0
  %569 = vmatprep.subr.bf16.mxu0 0
  %570 = vmatpush1.bf16.msra.mxu0 0
  %571 = vmatprep.subr.bf16.mxu0 0
  %572 = vmatpush1.bf16.msra.mxu0 0
  %573 = vmatprep.subr.bf16.mxu0 0
  %574 = vmatpush1.bf16.msra.mxu0 0
  %575 = vmatprep.subr.bf16.mxu0 0
  %576 = vmatpush1.bf16.msra.mxu0 0
  %577 = vmatprep.mubr.bf16.mxu0 0
  %578 = vmatmul.mubr.bf16.gmra.mrb[0].mxu0 %v540
  %v579 = vpop.f32.mrb[0].mxu0
  %v580 = vadd.f32 0.0, %v579
  %v581 = vpop.f32.mrb[0].mxu0
  %v582 = vpop.f32.mrb[0].mxu0
  %v583 = vpop.f32.mrb[0].mxu0
  %584 = vdwg.mxu0
  %586 = vrot.lane.b32.xlu0 %v358, 8
  %v587 = vpop.permute.xlu0 %586
  %590 = vrot.lane.b32.xlu0 %v469, 16
  %v591 = vpop.permute.xlu0 %590
  %594 = vrot.lane.b32.xlu0 %v580, 24
  %v595 = vpop.permute.xlu0 %594
  %v597 = vsel %vm143, %v247, %v587
  %vm598 = vcmask 130048
  %v599 = vsel %vm598, %v597, %v591
  %vm600 = vcmask 195584
  %v601 = vsel %vm600, %v599, %v595
  %603 = vrot.lane.b32.xlu0 %v313, 8
  %v604 = vpop.permute.xlu0 %603
  %607 = vrot.lane.b32.xlu0 %v424, 16
  %v608 = vpop.permute.xlu0 %607
  %611 = vrot.lane.b32.xlu0 %v535, 24
  %v612 = vpop.permute.xlu0 %611
  %v614 = vsel %vm143, %v201, %v604
  %v615 = vsel %vm598, %v614, %v608
  %v616 = vsel %vm600, %v615, %v612
  %v617 = vpack.c.bf16 %v136, %v136
  %619 = vrot.lane.b32.xlu0 %v617, 120
  %v620 = vpop.permute.xlu0 %619
  %v622 = vsel %vm143, %v617, 0
  %v625 = vsel %vm143, %v620, 0
  %627 = vmatprep.subr.bf16.mxu0 0
  %628 = vmatpush1.bf16.xpose.msra.mxu0 %v625
  %629 = vmatprep.subr.bf16.mxu0 0
  %630 = vmatpush1.bf16.xpose.msra.mxu0 0
  %631 = vmatprep.subr.bf16.mxu0 0
  %632 = vmatpush1.bf16.xpose.msra.mxu0 0
  %633 = vmatprep.subr.bf16.mxu0 0
  %634 = vmatpush1.bf16.xpose.msra.mxu0 0
  %635 = vmatprep.subr.bf16.mxu0 0
  %636 = vmatpush1.bf16.xpose.msra.mxu0 0
  %637 = vmatprep.subr.bf16.mxu0 0
  %638 = vmatpush1.bf16.xpose.msra.mxu0 0
  %639 = vmatprep.subr.bf16.mxu0 0
  %640 = vmatpush1.bf16.xpose.msra.mxu0 0
  %641 = vmatprep.subr.bf16.mxu0 0
  %642 = vmatpush1.bf16.xpose.msra.mxu0 0
  %643 = vmatprep.subr.bf16.mxu0 0
  %644 = vmatpush1.bf16.xpose.msra.mxu0 0
  %645 = vmatprep.subr.bf16.mxu0 0
  %646 = vmatpush1.bf16.xpose.msra.mxu0 0
  %647 = vmatprep.subr.bf16.mxu0 0
  %648 = vmatpush1.bf16.xpose.msra.mxu0 0
  %649 = vmatprep.subr.bf16.mxu0 0
  %650 = vmatpush1.bf16.xpose.msra.mxu0 0
  %651 = vmatprep.subr.bf16.mxu0 0
  %652 = vmatpush1.bf16.xpose.msra.mxu0 0
  %653 = vmatprep.subr.bf16.mxu0 0
  %654 = vmatpush1.bf16.xpose.msra.mxu0 0
  %655 = vmatprep.subr.bf16.mxu0 0
  %656 = vmatpush1.bf16.xpose.msra.mxu0 0
  %657 = vmatprep.subr.bf16.mxu0 0
  %658 = vmatpush1.bf16.xpose.msra.mxu0 0
  %659 = vmatprep.mubr.bf16.mxu0 0
  %660 = vmatmul.mubr.bf16.gmra.mrb[0].mxu0 %v622
  %v661 = vpop.f32.mrb[0].mxu0
  %v662 = vadd.f32 0.0, %v661
  %v663 = vpop.f32.mrb[0].mxu0
  %v664 = vpop.f32.mrb[0].mxu0
  %v665 = vpop.f32.mrb[0].mxu0
  %666 = vdwg.mxu0
  %v667 = vmul.f32 %v662, 0.35355338
  %v668 = vsel %vm143, %v667, -inf
  %669 = vmax.xlane.f32.xlu0 %v668
  %v670 = vpop.xlane.xlu0 %669
  %v671 = vsub.f32 %v667, %v670
  %v672 = vmul.f32 %v671, 1.442695
  %v673 = vpow.pop %v672
  %v674 = vsel %vm143, %v673, 0.0
  %675 = vadd.xlane.f32.xlu0 %v674
  %v676 = vpop.xlane.xlu0 %675
  %v677 = vrcp.pop %v676
  %v678 = vmul.f32 %v673, %v677
  %v679 = vpack.c.bf16 %v678, %v678
  %680 = vrot.lane.b32.xlu0 %v617, 112
  %v681 = vpop.permute.xlu0 %680
  %v683 = vsel %vm143, %v679, 0
  %v686 = vsel %vm208, %v681, 0
  %688 = vmatprep.subr.bf16.mxu0 0
  %689 = vmatpush1.bf16.msra.mxu0 %v686
  %690 = vmatprep.subr.bf16.mxu0 0
  %691 = vmatpush1.bf16.msra.mxu0 0
  %692 = vmatprep.subr.bf16.mxu0 0
  %693 = vmatpush1.bf16.msra.mxu0 0
  %694 = vmatprep.subr.bf16.mxu0 0
  %695 = vmatpush1.bf16.msra.mxu0 0
  %696 = vmatprep.subr.bf16.mxu0 0
  %697 = vmatpush1.bf16.msra.mxu0 0
  %698 = vmatprep.subr.bf16.mxu0 0
  %699 = vmatpush1.bf16.msra.mxu0 0
  %700 = vmatprep.subr.bf16.mxu0 0
  %701 = vmatpush1.bf16.msra.mxu0 0
  %702 = vmatprep.subr.bf16.mxu0 0
  %703 = vmatpush1.bf16.msra.mxu0 0
  %704 = vmatprep.subr.bf16.mxu0 0
  %705 = vmatpush1.bf16.msra.mxu0 0
  %706 = vmatprep.subr.bf16.mxu0 0
  %707 = vmatpush1.bf16.msra.mxu0 0
  %708 = vmatprep.subr.bf16.mxu0 0
  %709 = vmatpush1.bf16.msra.mxu0 0
  %710 = vmatprep.subr.bf16.mxu0 0
  %711 = vmatpush1.bf16.msra.mxu0 0
  %712 = vmatprep.subr.bf16.mxu0 0
  %713 = vmatpush1.bf16.msra.mxu0 0
  %714 = vmatprep.subr.bf16.mxu0 0
  %715 = vmatpush1.bf16.msra.mxu0 0
  %716 = vmatprep.subr.bf16.mxu0 0
  %717 = vmatpush1.bf16.msra.mxu0 0
  %718 = vmatprep.subr.bf16.mxu0 0
  %719 = vmatpush1.bf16.msra.mxu0 0
  %720 = vmatprep.mubr.bf16.mxu0 0
  %721 = vmatmul.mubr.bf16.gmra.mrb[0].mxu0 %v683
  %v722 = vpop.f32.mrb[0].mxu0
  %v723 = vadd.f32 0.0, %v722
  %v724 = vpop.f32.mrb[0].mxu0
  %v725 = vpop.f32.mrb[0].mxu0
  %v726 = vpop.f32.mrb[0].mxu0
  %727 = vdwg.mxu0
  %728 = vrot.lane.b32.xlu0 %v617, 104
  %v729 = vpop.permute.xlu0 %728
  %730 = vrot.lane.b32.xlu0 %v617, 96
  %v731 = vpop.permute.xlu0 %730
  %v733 = vsel %vm143, %v729, 0
  %v736 = vsel %vm143, %v731, 0
  %738 = vmatprep.subr.bf16.mxu0 0
  %739 = vmatpush1.bf16.xpose.msra.mxu0 %v736
  %740 = vmatprep.subr.bf16.mxu0 0
  %741 = vmatpush1.bf16.xpose.msra.mxu0 0
  %742 = vmatprep.subr.bf16.mxu0 0
  %743 = vmatpush1.bf16.xpose.msra.mxu0 0
  %744 = vmatprep.subr.bf16.mxu0 0
  %745 = vmatpush1.bf16.xpose.msra.mxu0 0
  %746 = vmatprep.subr.bf16.mxu0 0
  %747 = vmatpush1.bf16.xpose.msra.mxu0 0
  %748 = vmatprep.subr.bf16.mxu0 0
  %749 = vmatpush1.bf16.xpose.msra.mxu0 0
  %750 = vmatprep.subr.bf16.mxu0 0
  %751 = vmatpush1.bf16.xpose.msra.mxu0 0
  %752 = vmatprep.subr.bf16.mxu0 0
  %753 = vmatpush1.bf16.xpose.msra.mxu0 0
  %754 = vmatprep.subr.bf16.mxu0 0
  %755 = vmatpush1.bf16.xpose.msra.mxu0 0
  %756 = vmatprep.subr.bf16.mxu0 0
  %757 = vmatpush1.bf16.xpose.msra.mxu0 0
  %758 = vmatprep.subr.bf16.mxu0 0
  %759 = vmatpush1.bf16.xpose.msra.mxu0 0
  %760 = vmatprep.subr.bf16.mxu0 0
  %761 = vmatpush1.bf16.xpose.msra.mxu0 0
  %762 = vmatprep.subr.bf16.mxu0 0
  %763 = vmatpush1.bf16.xpose.msra.mxu0 0
  %764 = vmatprep.subr.bf16.mxu0 0
  %765 = vmatpush1.bf16.xpose.msra.mxu0 0
  %766 = vmatprep.subr.bf16.mxu0 0
  %767 = vmatpush1.bf16.xpose.msra.mxu0 0
  %768 = vmatprep.subr.bf16.mxu0 0
  %769 = vmatpush1.bf16.xpose.msra.mxu0 0
  %770 = vmatprep.mubr.bf16.mxu0 0
  %771 = vmatmul.mubr.bf16.gmra.mrb[0].mxu0 %v733
  %v772 = vpop.f32.mrb[0].mxu0
  %v773 = vadd.f32 0.0, %v772
  %v774 = vpop.f32.mrb[0].mxu0
  %v775 = vpop.f32.mrb[0].mxu0
  %v776 = vpop.f32.mrb[0].mxu0
  %777 = vdwg.mxu0
  %v778 = vmul.f32 %v773, 0.35355338
  %v779 = vsel %vm143, %v778, -inf
  %780 = vmax.xlane.f32.xlu0 %v779
  %v781 = vpop.xlane.xlu0 %780
  %v782 = vsub.f32 %v778, %v781
  %v783 = vmul.f32 %v782, 1.442695
  %v784 = vpow.pop %v783
  %v785 = vsel %vm143, %v784, 0.0
  %786 = vadd.xlane.f32.xlu0 %v785
  %v787 = vpop.xlane.xlu0 %786
  %v788 = vrcp.pop %v787
  %v789 = vmul.f32 %v784, %v788
  %v790 = vpack.c.bf16 %v789, %v789
  %791 = vrot.lane.b32.xlu0 %v617, 88
  %v792 = vpop.permute.xlu0 %791
  %v794 = vsel %vm143, %v790, 0
  %v797 = vsel %vm208, %v792, 0
  %799 = vmatprep.subr.bf16.mxu0 0
  %800 = vmatpush1.bf16.msra.mxu0 %v797
  %801 = vmatprep.subr.bf16.mxu0 0
  %802 = vmatpush1.bf16.msra.mxu0 0
  %803 = vmatprep.subr.bf16.mxu0 0
  %804 = vmatpush1.bf16.msra.mxu0 0
  %805 = vmatprep.subr.bf16.mxu0 0
  %806 = vmatpush1.bf16.msra.mxu0 0
  %807 = vmatprep.subr.bf16.mxu0 0
  %808 = vmatpush1.bf16.msra.mxu0 0
  %809 = vmatprep.subr.bf16.mxu0 0
  %810 = vmatpush1.bf16.msra.mxu0 0
  %811 = vmatprep.subr.bf16.mxu0 0
  %812 = vmatpush1.bf16.msra.mxu0 0
  %813 = vmatprep.subr.bf16.mxu0 0
  %814 = vmatpush1.bf16.msra.mxu0 0
  %815 = vmatprep.subr.bf16.mxu0 0
  %816 = vmatpush1.bf16.msra.mxu0 0
  %817 = vmatprep.subr.bf16.mxu0 0
  %818 = vmatpush1.bf16.msra.mxu0 0
  %819 = vmatprep.subr.bf16.mxu0 0
  %820 = vmatpush1.bf16.msra.mxu0 0
  %821 = vmatprep.subr.bf16.mxu0 0
  %822 = vmatpush1.bf16.msra.mxu0 0
  %823 = vmatprep.subr.bf16.mxu0 0
  %824 = vmatpush1.bf16.msra.mxu0 0
  %825 = vmatprep.subr.bf16.mxu0 0
  %826 = vmatpush1.bf16.msra.mxu0 0
  %827 = vmatprep.subr.bf16.mxu0 0
  %828 = vmatpush1.bf16.msra.mxu0 0
  %829 = vmatprep.subr.bf16.mxu0 0
  %830 = vmatpush1.bf16.msra.mxu0 0
  %831 = vmatprep.mubr.bf16.mxu0 0
  %832 = vmatmul.mubr.bf16.gmra.mrb[0].mxu0 %v794
  %v833 = vpop.f32.mrb[0].mxu0
  %v834 = vadd.f32 0.0, %v833
  %v835 = vpop.f32.mrb[0].mxu0
  %v836 = vpop.f32.mrb[0].mxu0
  %v837 = vpop.f32.mrb[0].mxu0
  %838 = vdwg.mxu0
  %839 = vrot.lane.b32.xlu0 %v617, 80
  %v840 = vpop.permute.xlu0 %839
  %841 = vrot.lane.b32.xlu0 %v617, 72
  %v842 = vpop.permute.xlu0 %841
  %v844 = vsel %vm143, %v840, 0
  %v847 = vsel %vm143, %v842, 0
  %849 = vmatprep.subr.bf16.mxu0 0
  %850 = vmatpush1.bf16.xpose.msra.mxu0 %v847
  %851 = vmatprep.subr.bf16.mxu0 0
  %852 = vmatpush1.bf16.xpose.msra.mxu0 0
  %853 = vmatprep.subr.bf16.mxu0 0
  %854 = vmatpush1.bf16.xpose.msra.mxu0 0
  %855 = vmatprep.subr.bf16.mxu0 0
  %856 = vmatpush1.bf16.xpose.msra.mxu0 0
  %857 = vmatprep.subr.bf16.mxu0 0
  %858 = vmatpush1.bf16.xpose.msra.mxu0 0
  %859 = vmatprep.subr.bf16.mxu0 0
  %860 = vmatpush1.bf16.xpose.msra.mxu0 0
  %861 = vmatprep.subr.bf16.mxu0 0
  %862 = vmatpush1.bf16.xpose.msra.mxu0 0
  %863 = vmatprep.subr.bf16.mxu0 0
  %864 = vmatpush1.bf16.xpose.msra.mxu0 0
  %865 = vmatprep.subr.bf16.mxu0 0
  %866 = vmatpush1.bf16.xpose.msra.mxu0 0
  %867 = vmatprep.subr.bf16.mxu0 0
  %868 = vmatpush1.bf16.xpose.msra.mxu0 0
  %869 = vmatprep.subr.bf16.mxu0 0
  %870 = vmatpush1.bf16.xpose.msra.mxu0 0
  %871 = vmatprep.subr.bf16.mxu0 0
  %872 = vmatpush1.bf16.xpose.msra.mxu0 0
  %873 = vmatprep.subr.bf16.mxu0 0
  %874 = vmatpush1.bf16.xpose.msra.mxu0 0
  %875 = vmatprep.subr.bf16.mxu0 0
  %876 = vmatpush1.bf16.xpose.msra.mxu0 0
  %877 = vmatprep.subr.bf16.mxu0 0
  %878 = vmatpush1.bf16.xpose.msra.mxu0 0
  %879 = vmatprep.subr.bf16.mxu0 0
  %880 = vmatpush1.bf16.xpose.msra.mxu0 0
  %881 = vmatprep.mubr.bf16.mxu0 0
  %882 = vmatmul.mubr.bf16.gmra.mrb[0].mxu0 %v844
  %v883 = vpop.f32.mrb[0].mxu0
  %v884 = vadd.f32 0.0, %v883
  %v885 = vpop.f32.mrb[0].mxu0
  %v886 = vpop.f32.mrb[0].mxu0
  %v887 = vpop.f32.mrb[0].mxu0
  %888 = vdwg.mxu0
  %v889 = vmul.f32 %v884, 0.35355338
  %v890 = vsel %vm143, %v889, -inf
  %891 = vmax.xlane.f32.xlu0 %v890
  %v892 = vpop.xlane.xlu0 %891
  %v893 = vsub.f32 %v889, %v892
  %v894 = vmul.f32 %v893, 1.442695
  %v895 = vpow.pop %v894
  %v896 = vsel %vm143, %v895, 0.0
  %897 = vadd.xlane.f32.xlu0 %v896
  %v898 = vpop.xlane.xlu0 %897
  %v899 = vrcp.pop %v898
  %v900 = vmul.f32 %v895, %v899
  %v901 = vpack.c.bf16 %v900, %v900
  %902 = vrot.lane.b32.xlu0 %v617, 64
  %v903 = vpop.permute.xlu0 %902
  %v905 = vsel %vm143, %v901, 0
  %v908 = vsel %vm208, %v903, 0
  %910 = vmatprep.subr.bf16.mxu0 0
  %911 = vmatpush1.bf16.msra.mxu0 %v908
  %912 = vmatprep.subr.bf16.mxu0 0
  %913 = vmatpush1.bf16.msra.mxu0 0
  %914 = vmatprep.subr.bf16.mxu0 0
  %915 = vmatpush1.bf16.msra.mxu0 0
  %916 = vmatprep.subr.bf16.mxu0 0
  %917 = vmatpush1.bf16.msra.mxu0 0
  %918 = vmatprep.subr.bf16.mxu0 0
  %919 = vmatpush1.bf16.msra.mxu0 0
  %920 = vmatprep.subr.bf16.mxu0 0
  %921 = vmatpush1.bf16.msra.mxu0 0
  %922 = vmatprep.subr.bf16.mxu0 0
  %923 = vmatpush1.bf16.msra.mxu0 0
  %924 = vmatprep.subr.bf16.mxu0 0
  %925 = vmatpush1.bf16.msra.mxu0 0
  %926 = vmatprep.subr.bf16.mxu0 0
  %927 = vmatpush1.bf16.msra.mxu0 0
  %928 = vmatprep.subr.bf16.mxu0 0
  %929 = vmatpush1.bf16.msra.mxu0 0
  %930 = vmatprep.subr.bf16.mxu0 0
  %931 = vmatpush1.bf16.msra.mxu0 0
  %932 = vmatprep.subr.bf16.mxu0 0
  %933 = vmatpush1.bf16.msra.mxu0 0
  %934 = vmatprep.subr.bf16.mxu0 0
  %935 = vmatpush1.bf16.msra.mxu0 0
  %936 = vmatprep.subr.bf16.mxu0 0
  %937 = vmatpush1.bf16.msra.mxu0 0
  %938 = vmatprep.subr.bf16.mxu0 0
  %939 = vmatpush1.bf16.msra.mxu0 0
  %940 = vmatprep.subr.bf16.mxu0 0
  %941 = vmatpush1.bf16.msra.mxu0 0
  %942 = vmatprep.mubr.bf16.mxu0 0
  %943 = vmatmul.mubr.bf16.gmra.mrb[0].mxu0 %v905
  %v944 = vpop.f32.mrb[0].mxu0
  %v945 = vadd.f32 0.0, %v944
  %v946 = vpop.f32.mrb[0].mxu0
  %v947 = vpop.f32.mrb[0].mxu0
  %v948 = vpop.f32.mrb[0].mxu0
  %949 = vdwg.mxu0
  %950 = vrot.lane.b32.xlu0 %v617, 56
  %v951 = vpop.permute.xlu0 %950
  %952 = vrot.lane.b32.xlu0 %v617, 48
  %v953 = vpop.permute.xlu0 %952
  %v955 = vsel %vm143, %v951, 0
  %v958 = vsel %vm143, %v953, 0
  %960 = vmatprep.subr.bf16.mxu0 0
  %961 = vmatpush1.bf16.xpose.msra.mxu0 %v958
  %962 = vmatprep.subr.bf16.mxu0 0
  %963 = vmatpush1.bf16.xpose.msra.mxu0 0
  %964 = vmatprep.subr.bf16.mxu0 0
  %965 = vmatpush1.bf16.xpose.msra.mxu0 0
  %966 = vmatprep.subr.bf16.mxu0 0
  %967 = vmatpush1.bf16.xpose.msra.mxu0 0
  %968 = vmatprep.subr.bf16.mxu0 0
  %969 = vmatpush1.bf16.xpose.msra.mxu0 0
  %970 = vmatprep.subr.bf16.mxu0 0
  %971 = vmatpush1.bf16.xpose.msra.mxu0 0
  %972 = vmatprep.subr.bf16.mxu0 0
  %973 = vmatpush1.bf16.xpose.msra.mxu0 0
  %974 = vmatprep.subr.bf16.mxu0 0
  %975 = vmatpush1.bf16.xpose.msra.mxu0 0
  %976 = vmatprep.subr.bf16.mxu0 0
  %977 = vmatpush1.bf16.xpose.msra.mxu0 0
  %978 = vmatprep.subr.bf16.mxu0 0
  %979 = vmatpush1.bf16.xpose.msra.mxu0 0
  %980 = vmatprep.subr.bf16.mxu0 0
  %981 = vmatpush1.bf16.xpose.msra.mxu0 0
  %982 = vmatprep.subr.bf16.mxu0 0
  %983 = vmatpush1.bf16.xpose.msra.mxu0 0
  %984 = vmatprep.subr.bf16.mxu0 0
  %985 = vmatpush1.bf16.xpose.msra.mxu0 0
  %986 = vmatprep.subr.bf16.mxu0 0
  %987 = vmatpush1.bf16.xpose.msra.mxu0 0
  %988 = vmatprep.subr.bf16.mxu0 0
  %989 = vmatpush1.bf16.xpose.msra.mxu0 0
  %990 = vmatprep.subr.bf16.mxu0 0
  %991 = vmatpush1.bf16.xpose.msra.mxu0 0
  %992 = vmatprep.mubr.bf16.mxu0 0
  %993 = vmatmul.mubr.bf16.gmra.mrb[0].mxu0 %v955
  %v994 = vpop.f32.mrb[0].mxu0
  %v995 = vadd.f32 0.0, %v994
  %v996 = vpop.f32.mrb[0].mxu0
  %v997 = vpop.f32.mrb[0].mxu0
  %v998 = vpop.f32.mrb[0].mxu0
  %999 = vdwg.mxu0
  %v1000 = vmul.f32 %v995, 0.35355338
  %v1001 = vsel %vm143, %v1000, -inf
  %1002 = vmax.xlane.f32.xlu0 %v1001
  %v1003 = vpop.xlane.xlu0 %1002
  %v1004 = vsub.f32 %v1000, %v1003
  %v1005 = vmul.f32 %v1004, 1.442695
  %v1006 = vpow.pop %v1005
  %v1007 = vsel %vm143, %v1006, 0.0
  %1008 = vadd.xlane.f32.xlu0 %v1007
  %v1009 = vpop.xlane.xlu0 %1008
  %v1010 = vrcp.pop %v1009
  %v1011 = vmul.f32 %v1006, %v1010
  %v1012 = vpack.c.bf16 %v1011, %v1011
  %1013 = vrot.lane.b32.xlu0 %v617, 40
  %v1014 = vpop.permute.xlu0 %1013
  %v1016 = vsel %vm143, %v1012, 0
  %v1019 = vsel %vm208, %v1014, 0
  %1021 = vmatprep.subr.bf16.mxu0 0
  %1022 = vmatpush1.bf16.msra.mxu0 %v1019
  %1023 = vmatprep.subr.bf16.mxu0 0
  %1024 = vmatpush1.bf16.msra.mxu0 0
  %1025 = vmatprep.subr.bf16.mxu0 0
  %1026 = vmatpush1.bf16.msra.mxu0 0
  %1027 = vmatprep.subr.bf16.mxu0 0
  %1028 = vmatpush1.bf16.msra.mxu0 0
  %1029 = vmatprep.subr.bf16.mxu0 0
  %1030 = vmatpush1.bf16.msra.mxu0 0
  %1031 = vmatprep.subr.bf16.mxu0 0
  %1032 = vmatpush1.bf16.msra.mxu0 0
  %1033 = vmatprep.subr.bf16.mxu0 0
  %1034 = vmatpush1.bf16.msra.mxu0 0
  %1035 = vmatprep.subr.bf16.mxu0 0
  %1036 = vmatpush1.bf16.msra.mxu0 0
  %1037 = vmatprep.subr.bf16.mxu0 0
  %1038 = vmatpush1.bf16.msra.mxu0 0
  %1039 = vmatprep.subr.bf16.mxu0 0
  %1040 = vmatpush1.bf16.msra.mxu0 0
  %1041 = vmatprep.subr.bf16.mxu0 0
  %1042 = vmatpush1.bf16.msra.mxu0 0
  %1043 = vmatprep.subr.bf16.mxu0 0
  %1044 = vmatpush1.bf16.msra.mxu0 0
  %1045 = vmatprep.subr.bf16.mxu0 0
  %1046 = vmatpush1.bf16.msra.mxu0 0
  %1047 = vmatprep.subr.bf16.mxu0 0
  %1048 = vmatpush1.bf16.msra.mxu0 0
  %1049 = vmatprep.subr.bf16.mxu0 0
  %1050 = vmatpush1.bf16.msra.mxu0 0
  %1051 = vmatprep.subr.bf16.mxu0 0
  %1052 = vmatpush1.bf16.msra.mxu0 0
  %1053 = vmatprep.mubr.bf16.mxu0 0
  %1054 = vmatmul.mubr.bf16.gmra.mrb[0].mxu0 %v1016
  %v1055 = vpop.f32.mrb[0].mxu0
  %v1056 = vadd.f32 0.0, %v1055
  %v1057 = vpop.f32.mrb[0].mxu0
  %v1058 = vpop.f32.mrb[0].mxu0
  %v1059 = vpop.f32.mrb[0].mxu0
  %1060 = vdwg.mxu0
  %1062 = vrot.lane.b32.xlu0 %v834, 8
  %v1063 = vpop.permute.xlu0 %1062
  %1066 = vrot.lane.b32.xlu0 %v945, 16
  %v1067 = vpop.permute.xlu0 %1066
  %1070 = vrot.lane.b32.xlu0 %v1056, 24
  %v1071 = vpop.permute.xlu0 %1070
  %v1073 = vsel %vm143, %v723, %v1063
  %v1074 = vsel %vm598, %v1073, %v1067
  %v1075 = vsel %vm600, %v1074, %v1071
  %1077 = vrot.lane.b32.xlu0 %v789, 8
  %v1078 = vpop.permute.xlu0 %1077
  %1081 = vrot.lane.b32.xlu0 %v900, 16
  %v1082 = vpop.permute.xlu0 %1081
  %1085 = vrot.lane.b32.xlu0 %v1011, 24
  %v1086 = vpop.permute.xlu0 %1085
  %v1088 = vsel %vm143, %v678, %v1078
  %v1089 = vsel %vm598, %v1088, %v1082
  %v1090 = vsel %vm600, %v1089, %v1086
  %v1091 = vpack.c.bf16 %v1075, %v601
  %v1092 = vld [vmem:[%s2] sm:$0xf]
  %v1093 = vld [vmem:[%s2 + $0x4] sm:$0xf]
  %v1094 = vld [vmem:[%s2 + $0x8] sm:$0xf]
  %v1095 = vld [vmem:[%s2 + $0xc] sm:$0xf]
  %v1096 = vlaneseq
  %v1097 = vshrl.u32 %v1096, 7
  %v1098 = vsub.s32 0, %v1097
  %v1099 = vrot.slane %v29, %v1098
  %v1104 = vunpack.c.l.b16 %v1092
  %v1105 = vunpack.c.l.b16 %v1093
  %v1106 = vunpack.c.l.b16 %v1094
  %v1107 = vunpack.c.l.b16 %v1095
  %v1108 = vpack.c.b16 %v1105, %v1104
  %v1109 = vpack.c.b16 %v1107, %v1106
  %v1113 = vsel %vm34, %v1091, 0
  %1115 = vmatprep.subr.bf16.mxu0 0
  %1116 = vmatpush1.bf16.msra.mxu0 %v1108
  %1117 = vmatprep.subr.bf16.mxu0 0
  %1118 = vmatpush1.bf16.msra.mxu0 %v1109
  %1119 = vmatprep.subr.bf16.mxu0 0
  %1120 = vmatpush1.bf16.msra.mxu0 0
  %1121 = vmatprep.subr.bf16.mxu0 0
  %1122 = vmatpush1.bf16.msra.mxu0 0
  %1123 = vmatprep.subr.bf16.mxu0 0
  %1124 = vmatpush1.bf16.msra.mxu0 0
  %1125 = vmatprep.subr.bf16.mxu0 0
  %1126 = vmatpush1.bf16.msra.mxu0 0
  %1127 = vmatprep.subr.bf16.mxu0 0
  %1128 = vmatpush1.bf16.msra.mxu0 0
  %1129 = vmatprep.subr.bf16.mxu0 0
  %1130 = vmatpush1.bf16.msra.mxu0 0
  %1131 = vmatprep.subr.bf16.mxu0 0
  %1132 = vmatpush1.bf16.msra.mxu0 0
  %1133 = vmatprep.subr.bf16.mxu0 0
  %1134 = vmatpush1.bf16.msra.mxu0 0
  %1135 = vmatprep.subr.bf16.mxu0 0
  %1136 = vmatpush1.bf16.msra.mxu0 0
  %1137 = vmatprep.subr.bf16.mxu0 0
  %1138 = vmatpush1.bf16.msra.mxu0 0
  %1139 = vmatprep.subr.bf16.mxu0 0
  %1140 = vmatpush1.bf16.msra.mxu0 0
  %1141 = vmatprep.subr.bf16.mxu0 0
  %1142 = vmatpush1.bf16.msra.mxu0 0
  %1143 = vmatprep.subr.bf16.mxu0 0
  %1144 = vmatpush1.bf16.msra.mxu0 0
  %1145 = vmatprep.subr.bf16.mxu0 0
  %1146 = vmatpush1.bf16.msra.mxu0 0
  %1147 = vmatprep.mubr.bf16.mxu0 0
  %1148 = vmatmul.mubr.bf16.gmra.mrb[0].mxu0 %v1113
  %v1149 = vpop.f32.mrb[0].mxu0
  %v1150 = vadd.f32 %v1099, %v1149
  %v1151 = vpop.f32.mrb[0].mxu0
  %v1152 = vpop.f32.mrb[0].mxu0
  %v1153 = vadd.f32 %v1099, %v1152
  %v1154 = vpop.f32.mrb[0].mxu0
  %1155 = vdwg.mxu0
  %v1156 = vadd.f32 %v24, %v1150
  %v1157 = vadd.f32 %v25, %v1153
  %v1158 = vsel %vm34, %v1156, 0.0
  %1159 = vadd.xlane.f32.xlu0 %v1158
  %v1160 = vpop.xlane.xlu0 %1159
  %v1161 = vsel %vm34, %v1157, 0.0
  %1162 = vadd.xlane.f32.xlu0 %v1161
  %v1163 = vpop.xlane.xlu0 %1162
  %v1164 = vmul.f32 %v1160, %v41
  %v1165 = vmul.f32 %v1163, %v41
  %v1166 = vsub.f32 %v1156, %v1164
  %v1167 = vsub.f32 %v1157, %v1165
  %v1168 = vmul.f32 %v1166, %v1166
  %v1169 = vmul.f32 %v1167, %v1167
  %v1170 = vsel %vm34, %v1168, 0.0
  %1171 = vadd.xlane.f32.xlu0 %v1170
  %v1172 = vpop.xlane.xlu0 %1171
  %v1173 = vsel %vm34, %v1169, 0.0
  %1174 = vadd.xlane.f32.xlu0 %v1173
  %v1175 = vpop.xlane.xlu0 %1174
  %v1176 = vmul.f32 %v1172, %v41
  %v1177 = vmul.f32 %v1175, %v41
  %v1178 = vadd.f32 %v1176, 1e-06
  %v1179 = vadd.f32 %v1177, 1e-06
  %v1180 = vrsqrt.pop %v1178
  %v1181 = vrsqrt.pop %v1179
  %v1182 = vmul.f32 %v1166, %v1180
  %v1183 = vmul.f32 %v1167, %v1181
  %v1184 = vlaneseq
  %v1185 = vshrl.u32 %v1184, 7
  %v1186 = vsub.s32 0, %v1185
  %v1187 = vrot.slane %v30, %v1186
  %v1188 = vmul.f32 %v1182, %v1187
  %v1189 = vmul.f32 %v1183, %v1187
  %v1190 = vlaneseq
  %v1191 = vshrl.u32 %v1190, 7
  %v1192 = vsub.s32 0, %v1191
  %v1193 = vrot.slane %v31, %v1192
  %v1194 = vadd.f32 %v1188, %v1193
  %v1195 = vadd.f32 %v1189, %v1193
  %v1196 = vpack.c.bf16 %v1195, %v1194
  %v1197 = vld [vmem:[%s3] sm:$0xf]
  %v1198 = vld [vmem:[%s3 + $0x4] sm:$0xf]
  %v1199 = vld [vmem:[%s3 + $0x8] sm:$0xf]
  %v1200 = vld [vmem:[%s3 + $0xc] sm:$0xf]
  %v1201 = vlaneseq
  %v1202 = vshrl.u32 %v1201, 7
  %v1203 = vsub.s32 0, %v1202
  %v1204 = vrot.slane %v32, %v1203
  %v1209 = vunpack.c.l.b16 %v1197
  %v1210 = vunpack.c.l.b16 %v1198
  %v1211 = vunpack.c.l.b16 %v1199
  %v1212 = vunpack.c.l.b16 %v1200
  %v1213 = vpack.c.b16 %v1210, %v1209
  %v1214 = vpack.c.b16 %v1212, %v1211
  %v1218 = vsel %vm34, %v1196, 0
  %1220 = vmatprep.subr.bf16.mxu0 0
  %1221 = vmatpush1.bf16.msra.mxu0 %v1213
  %1222 = vmatprep.subr.bf16.mxu0 0
  %1223 = vmatpush1.bf16.msra.mxu0 %v1214
  %1224 = vmatprep.subr.bf16.mxu0 0
  %1225 = vmatpush1.bf16.msra.mxu0 0
  %1226 = vmatprep.subr.bf16.mxu0 0
  %1227 = vmatpush1.bf16.msra.mxu0 0
  %1228 = vmatprep.subr.bf16.mxu0 0
  %1229 = vmatpush1.bf16.msra.mxu0 0
  %1230 = vmatprep.subr.bf16.mxu0 0
  %1231 = vmatpush1.bf16.msra.mxu0 0
  %1232 = vmatprep.subr.bf16.mxu0 0
  %1233 = vmatpush1.bf16.msra.mxu0 0
  %1234 = vmatprep.subr.bf16.mxu0 0
  %1235 = vmatpush1.bf16.msra.mxu0 0
  %1236 = vmatprep.subr.bf16.mxu0 0
  %1237 = vmatpush1.bf16.msra.mxu0 0
  %1238 = vmatprep.subr.bf16.mxu0 0
  %1239 = vmatpush1.bf16.msra.mxu0 0
  %1240 = vmatprep.subr.bf16.mxu0 0
  %1241 = vmatpush1.bf16.msra.mxu0 0
  %1242 = vmatprep.subr.bf16.mxu0 0
  %1243 = vmatpush1.bf16.msra.mxu0 0
  %1244 = vmatprep.subr.bf16.mxu0 0
  %1245 = vmatpush1.bf16.msra.mxu0 0
  %1246 = vmatprep.subr.bf16.mxu0 0
  %1247 = vmatpush1.bf16.msra.mxu0 0
  %1248 = vmatprep.subr.bf16.mxu0 0
  %1249 = vmatpush1.bf16.msra.mxu0 0
  %1250 = vmatprep.subr.bf16.mxu0 0
  %1251 = vmatpush1.bf16.msra.mxu0 0
  %1252 = vmatprep.mubr.bf16.mxu0 0
  %1253 = vmatmul.mubr.bf16.gmra.mrb[0].mxu0 %v1218
  %v1254 = vpop.f32.mrb[0].mxu0
  %v1255 = vadd.f32 %v1204, %v1254
  %v1256 = vpop.f32.mrb[0].mxu0
  %v1257 = vpop.f32.mrb[0].mxu0
  %v1258 = vadd.f32 %v1204, %v1257
  %v1259 = vpop.f32.mrb[0].mxu0
  %1260 = vdwg.mxu0
  %v1261 = vmul.f32 %v1255, %v1255
  %v1262 = vmul.f32 %v1258, %v1258
  %v1263 = vmul.f32 %v1255, %v1261
  %v1264 = vmul.f32 %v1258, %v1262
  %v1265 = vmul.f32 %v1263, 0.044715
  %v1266 = vmul.f32 %v1264, 0.044715
  %v1267 = vadd.f32 %v1255, %v1265
  %v1268 = vadd.f32 %v1258, %v1266
  %v1269 = vmul.f32 %v1267, 0.7978846
  %v1270 = vmul.f32 %v1268, 0.7978846
  %v1271 = vtanh.pop %v1269
  %v1272 = vtanh.pop %v1270
  %v1273 = vadd.f32 %v1271, 1.0
  %v1274 = vadd.f32 %v1272, 1.0
  %v1275 = vmul.f32 %v1273, 0.5
  %v1276 = vmul.f32 %v1274, 0.5
  %v1277 = vmul.f32 %v1255, %v1275
  %v1278 = vmul.f32 %v1258, %v1276
  %v1279 = vpack.c.bf16 %v1278, %v1277
  %v1280 = vld [vmem:[%s4] sm:$0xf]
  %v1281 = vld [vmem:[%s4 + $0x4] sm:$0xf]
  %v1282 = vld [vmem:[%s4 + $0x8] sm:$0xf]
  %v1283 = vld [vmem:[%s4 + $0xc] sm:$0xf]
  %v1284 = vld [vmem:[%s4 + $0x10] sm:$0xf]
  %v1285 = vld [vmem:[%s4 + $0x14] sm:$0xf]
  %v1286 = vld [vmem:[%s4 + $0x18] sm:$0xf]
  %v1287 = vld [vmem:[%s4 + $0x1c] sm:$0xf]
  %v1288 = vlaneseq
  %v1289 = vshrl.u32 %v1288, 7
  %v1290 = vsub.s32 0, %v1289
  %v1291 = vrot.slane %v33, %v1290
  %v1300 = vunpack.c.l.b16 %v1280
  %v1301 = vunpack.c.l.b16 %v1281
  %v1302 = vunpack.c.l.b16 %v1282
  %v1303 = vunpack.c.l.b16 %v1283
  %v1304 = vunpack.c.l.b16 %v1284
  %v1305 = vunpack.c.l.b16 %v1285
  %v1306 = vunpack.c.l.b16 %v1286
  %v1307 = vunpack.c.l.b16 %v1287
  %v1308 = vpack.c.b16 %v1301, %v1300
  %v1309 = vpack.c.b16 %v1303, %v1302
  %v1310 = vpack.c.b16 %v1305, %v1304
  %v1311 = vpack.c.b16 %v1307, %v1306
  %vm1316 = vcmask 523264
  %v1318 = vsel %vm1316, %v1279, 0
  %1320 = vmatprep.subr.bf16.mxu0 0
  %1321 = vmatpush1.bf16.msra.mxu0 %v1308
  %1322 = vmatprep.subr.bf16.mxu0 0
  %1323 = vmatpush1.bf16.msra.mxu0 %v1309
  %1324 = vmatprep.subr.bf16.mxu0 0
  %1325 = vmatpush1.bf16.msra.mxu0 %v1310
  %1326 = vmatprep.subr.bf16.mxu0 0
  %1327 = vmatpush1.bf16.msra.mxu0 %v1311
  %1328 = vmatprep.subr.bf16.mxu0 0
  %1329 = vmatpush1.bf16.msra.mxu0 0
  %1330 = vmatprep.subr.bf16.mxu0 0
  %1331 = vmatpush1.bf16.msra.mxu0 0
  %1332 = vmatprep.subr.bf16.mxu0 0
  %1333 = vmatpush1.bf16.msra.mxu0 0
  %1334 = vmatprep.subr.bf16.mxu0 0
  %1335 = vmatpush1.bf16.msra.mxu0 0
  %1336 = vmatprep.subr.bf16.mxu0 0
  %1337 = vmatpush1.bf16.msra.mxu0 0
  %1338 = vmatprep.subr.bf16.mxu0 0
  %1339 = vmatpush1.bf16.msra.mxu0 0
  %1340 = vmatprep.subr.bf16.mxu0 0
  %1341 = vmatpush1.bf16.msra.mxu0 0
  %1342 = vmatprep.subr.bf16.mxu0 0
  %1343 = vmatpush1.bf16.msra.mxu0 0
  %1344 = vmatprep.subr.bf16.mxu0 0
  %1345 = vmatpush1.bf16.msra.mxu0 0
  %1346 = vmatprep.subr.bf16.mxu0 0
  %1347 = vmatpush1.bf16.msra.mxu0 0
  %1348 = vmatprep.subr.bf16.mxu0 0
  %1349 = vmatpush1.bf16.msra.mxu0 0
  %1350 = vmatprep.subr.bf16.mxu0 0
  %1351 = vmatpush1.bf16.msra.mxu0 0
  %1352 = vmatprep.mubr.bf16.mxu0 0
  %1353 = vmatmul.mubr.bf16.gmra.mrb[0].mxu0 %v1318
  %v1354 = vpop.f32.mrb[0].mxu0
  %v1355 = vadd.f32 %v1291, %v1354
  %v1356 = vpop.f32.mrb[0].mxu0
  %v1357 = vpop.f32.mrb[0].mxu0
  %v1358 = vadd.f32 %v1291, %v1357
  %v1359 = vpop.f32.mrb[0].mxu0
  %1360 = vdwg.mxu0
  %v1361 = vadd.f32 %v1156, %v1355
  %v1362 = vadd.f32 %v1157, %v1358
  %1365 = vrot.lane.b32.xlu0 %v616, 32
  %v1366 = vpop.permute.xlu0 %1365
  %1367 = vrot.lane.b32.xlu0 %v1090, 32
  %v1368 = vpop.permute.xlu0 %1367
  %v1371 = vsel %vm34, %v1361, %v1366
  %v1372 = vsel %vm34, %v1362, %v1368
  %1373 = vst.msk [vmem:[%s6] sm:$0xff] %vm1316, %v1371
  %1374 = vst.msk [vmem:[%s6 + $0x8] sm:$0xff] %vm1316, %v1372
  // Predicated region
  $region26: #{encoder_forward.1} parent=0 // pred_check
    _
  $region27: #{encoder_forward.1} parent=0 // pred_check_branch
    %1376 = sbr.rel (0) target = $region29
  $region28: #{encoder_forward.1} parent=0 // pred_region
    _
  $region29: #{encoder_forward.1} parent=0 // pred_fallthru
    _
  // Predicated region
  $region30: #{encoder_forward.1} parent=0 // pred_check
    _
  $region31: #{encoder_forward.1} parent=0 // pred_check_branch
    %1378 = sbr.rel (0) target = $region33
  $region32: #{encoder_forward.1} parent=0 // pred_region
    _
  $region33: #{encoder_forward.1} parent=0 // pred_fallthru
    _

</llo_original>
